<compile_context>
chip_gen: v7x
topology: tpu7x:2x2x1
jax: 0.10.0
libtpu: 0.0.40
codegen_flags: <defaults>
</compile_context>

<pallas_src>
import jax
import jax.numpy as jnp
import numpy as np
from jax.experimental import pallas as pl
from jax.experimental.pallas import tpu as pltpu

_LANES = 128
_SUBLANES = 8


def _round_up(x, m):
    return ((x + m - 1) // m) * m


def _rlstm_kernel(seq_ref,    # (Tc, Bb, I)  input chunk (time-major)
                  wx_ref,     # (I, 4*Hp)    fc1-folded input->gates weights
                  b_ref,      # (1, 4*Hp)    all biases folded together
                  whh_ref,    # (Hp, 4*Hp)   recurrent weights
                  wo_ref,     # (Hp, Op)     hidden2output weights
                  bo_ref,     # (1, Op)      hidden2output bias
                  out_ref,    # (Bb, Op)
                  h_ref,      # VMEM scratch (Bb, Hp) persistent hidden state
                  c_ref):     # VMEM scratch (Bb, Hp) persistent cell state
    t_chunk, b_blk, in_dim = seq_ref.shape
    hp = whh_ref.shape[0]
    cdt = wx_ref.dtype
    t = pl.program_id(1)

    @pl.when(t == 0)
    def _init():
        h_ref[...] = jnp.zeros_like(h_ref)
        c_ref[...] = jnp.zeros_like(c_ref)

    # Chunk-wide input projection (fc1 folded into W_ih) + all biases.
    # One MXU pass, independent of the recurrence (off the critical path).
    x2 = seq_ref[...].astype(cdt).reshape(t_chunk * b_blk, in_dim)
    xg = (jnp.dot(x2, wx_ref[...], preferred_element_type=jnp.float32)
          + b_ref[...])                                     # (Tc*Bb, 4Hp) f32

    h = h_ref[...]
    c = c_ref[...]
    whh = whh_ref[...]
    for k in range(t_chunk):                                # static unroll
        gates = xg[k * b_blk:(k + 1) * b_blk] + jnp.dot(
            h.astype(cdt), whh, preferred_element_type=jnp.float32)
        i_g = jax.nn.sigmoid(gates[:, 0 * hp:1 * hp])       # lane-aligned slices
        f_g = jax.nn.sigmoid(gates[:, 1 * hp:2 * hp])
        g_g = jnp.tanh(gates[:, 2 * hp:3 * hp])
        o_g = jax.nn.sigmoid(gates[:, 3 * hp:4 * hp])
        c = f_g * c + i_g * g_g
        h = o_g * jnp.tanh(c)
    h_ref[...] = h
    c_ref[...] = c

    @pl.when(t == pl.num_programs(1) - 1)
    def _finalize():
        out_ref[...] = (jnp.dot(h_ref[...].astype(cdt), wo_ref[...],
                                preferred_element_type=jnp.float32)
                        + bo_ref[...])


def rlstm_forward(seq_btI, params, *, t_chunk=None, compute_dtype=jnp.float32):
    """seq_btI: (B, T, I) float32, PyTorch batch_first layout."""
    B, T, I = seq_btI.shape
    w1, b1 = params["w1"], params["b1"]
    wih, bih = params["wih"], params["bih"]
    whh, bhh = params["whh"], params["bhh"]
    wo, bo = params["wo"], params["bo"]
    H = whh.shape[0]
    O = wo.shape[1]

    # ---- fold fc1 into the LSTM input projection (exact: no nonlinearity) ----
    wx = w1 @ wih                              # (I, 4H)
    b_all = b1 @ wih + bih + bhh               # (1, 4H)

    # ---- pad: gates lane-aligned, output lane-dense, batch sublane-multiple --
    Hp = _round_up(H, _LANES)
    Op = _round_up(O, _LANES)
    if B <= _LANES:
        Bp = _round_up(B, _SUBLANES)
        b_blk = Bp
    else:
        Bp = _round_up(B, _LANES)
        b_blk = _LANES
    n_b = Bp // b_blk

    def pad_gates(m):                          # (K, 4H) -> (K, 4Hp), per-gate
        k = m.shape[0]
        m4 = m.reshape(k, 4, H)
        m4 = jnp.pad(m4, ((0, 0), (0, 0), (0, Hp - H)))
        return m4.reshape(k, 4 * Hp)

    wx_p = pad_gates(wx).astype(compute_dtype)                            # (I, 4Hp)
    b_p = pad_gates(b_all).astype(jnp.float32)                            # (1, 4Hp)
    whh_p = pad_gates(jnp.pad(whh, ((0, Hp - H), (0, 0)))).astype(compute_dtype)
    wo_p = jnp.pad(wo, ((0, Hp - H), (0, Op - O))).astype(compute_dtype)  # (Hp, Op)
    bo_p = jnp.pad(bo, ((0, 0), (0, Op - O))).astype(jnp.float32)         # (1, Op)

    seq_p = jnp.pad(seq_btI, ((0, Bp - B), (0, 0), (0, 0)))
    seq_tbi = jnp.transpose(seq_p, (1, 0, 2))                             # (T, Bp, I)

    # ---- time chunking: chunk = static unroll factor; grid pipelines DMA ----
    if t_chunk is None:
        t_chunk = next(c for c in (4, 2, 1) if T % c == 0)
    assert T % t_chunk == 0, "t_chunk must divide T"
    n_chunks = T // t_chunk

    full = lambda shape: pl.BlockSpec(shape, lambda b, t: (0, 0))
    out = pl.pallas_call(
        _rlstm_kernel,
        out_shape=jax.ShapeDtypeStruct((Bp, Op), jnp.float32),
        grid_spec=pltpu.PrefetchScalarGridSpec(
            num_scalar_prefetch=0,
            grid=(n_b, n_chunks),
            in_specs=[
                pl.BlockSpec((t_chunk, b_blk, I), lambda b, t: (t, b, 0)),
                full((I, 4 * Hp)),
                full((1, 4 * Hp)),
                full((Hp, 4 * Hp)),
                full((Hp, Op)),
                full((1, Op)),
            ],
            out_specs=pl.BlockSpec((b_blk, Op), lambda b, t: (b, 0)),
            scratch_shapes=[pltpu.VMEM((b_blk, Hp), jnp.float32),
                            pltpu.VMEM((b_blk, Hp), jnp.float32)],
        ),
        compiler_params=pltpu.CompilerParams(
            dimension_semantics=("parallel", "arbitrary")),
    )(seq_tbi, wx_p, b_p, whh_p, wo_p, bo_p)
    return out[:B, :O]


def init_params(key, input_size, embedding_dim, hidden_dim, output_size):
    ks = jax.random.split(key, 8)

    def u(k, shape, fan_in):
        bound = 1.0 / np.sqrt(fan_in)
        return jax.random.uniform(k, shape, jnp.float32, -bound, bound)

    H = hidden_dim
    return dict(
        w1=u(ks[0], (input_size, embedding_dim), input_size),
        b1=u(ks[1], (1, embedding_dim), input_size),
        wih=u(ks[2], (embedding_dim, 4 * H), H),
        bih=u(ks[3], (1, 4 * H), H),
        whh=u(ks[4], (H, 4 * H), H),
        bhh=u(ks[5], (1, 4 * H), H),
        wo=u(ks[6], (H, output_size), H),
        bo=u(ks[7], (1, output_size), H),
    )


def reference_forward(seq, p):
    """Pure-JAX reference mirroring torch.nn.LSTM semantics (gate order i,f,g,o)."""
    B, T, I = seq.shape
    H = p["whh"].shape[0]
    emb = seq @ p["w1"] + p["b1"]                  # (B, T, E)
    h = jnp.zeros((B, H), jnp.float32)
    c = jnp.zeros((B, H), jnp.float32)
    for t in range(T):
        gates = emb[:, t, :] @ p["wih"] + h @ p["whh"] + p["bih"] + p["bhh"]
        i_g = jax.nn.sigmoid(gates[:, 0 * H:1 * H])
        f_g = jax.nn.sigmoid(gates[:, 1 * H:2 * H])
        g_g = jnp.tanh(gates[:, 2 * H:3 * H])
        o_g = jax.nn.sigmoid(gates[:, 3 * H:4 * H])
        c = f_g * c + i_g * g_g
        h = o_g * jnp.tanh(c)
    return h @ p["wo"] + p["bo"]


if __name__ == "__main__":
    input_size, embedding_dim, hidden_dim, output_size = 16, 32, 32, 8
    batch, seq_len = 4, 8

    key = jax.random.PRNGKey(0)
    k_x, k_p = jax.random.split(key)
    seq = jax.random.normal(k_x, (batch, seq_len, input_size), jnp.float32)
    params = init_params(k_p, input_size, embedding_dim, hidden_dim, output_size)

    out = rlstm_forward(seq, params)           # f32 path (bf16 optional on v6e/v7x)
    out = jax.block_until_ready(out)

    ref = reference_forward(seq, params)
    np.testing.assert_allclose(np.asarray(out), np.asarray(ref), rtol=5e-4, atol=5e-5)
    print("KERNEL_OK")
</pallas_src>

<mosaic_0001>
module attributes {stable_mosaic.version = 11 : i64} {
  func.func @_rlstm_kernel(%arg0: i32, %arg1: i32, %arg2: memref<4x8x16xf32, #tpu.memory_space<vmem>>, %arg3: memref<16x512xf32, #tpu.memory_space<vmem>>, %arg4: memref<1x512xf32, #tpu.memory_space<vmem>>, %arg5: memref<128x512xf32, #tpu.memory_space<vmem>>, %arg6: memref<128x128xf32, #tpu.memory_space<vmem>>, %arg7: memref<1x128xf32, #tpu.memory_space<vmem>>, %arg8: memref<8x128xf32, #tpu.memory_space<vmem>>, %arg9: memref<8x128xf32, #tpu.memory_space<vmem>>, %arg10: memref<8x128xf32, #tpu.memory_space<vmem>>) attributes {dimension_semantics = [#tpu.dimension_semantics<parallel>, #tpu.dimension_semantics<arbitrary>], iteration_bounds = array<i64: 1, 2>, scalar_prefetch = 0 : i64, scratch_operands = 2 : i64, tpu.core_type = #tpu.core_type<tc>, window_params = [{transform_indices = @transform_0, window_bounds = array<i64: 4, 8, 16>}, {pipeline_mode = #tpu.pipeline_mode<synchronous>, transform_indices = @transform_1, window_bounds = array<i64: 16, 512>}, {pipeline_mode = #tpu.pipeline_mode<synchronous>, transform_indices = @transform_2, window_bounds = array<i64: 1, 512>}, {pipeline_mode = #tpu.pipeline_mode<synchronous>, transform_indices = @transform_3, window_bounds = array<i64: 128, 512>}, {pipeline_mode = #tpu.pipeline_mode<synchronous>, transform_indices = @transform_4, window_bounds = array<i64: 128, 128>}, {pipeline_mode = #tpu.pipeline_mode<synchronous>, transform_indices = @transform_5, window_bounds = array<i64: 1, 128>}, {transform_indices = @transform_6, window_bounds = array<i64: 8, 128>}]} {
    %c0_i32 = arith.constant 0 : i32
    %0 = arith.cmpi eq, %arg1, %c0_i32 : i32
    %1 = arith.extui %0 : i1 to i32
    %c0_i32_0 = arith.constant 0 : i32
    %2 = arith.cmpi ne, %1, %c0_i32_0 : i32
    scf.if %2 {
      %cst_34 = arith.constant 0.000000e+00 : f32
      %130 = vector.broadcast %cst_34 : f32 to vector<8x128xf32>
      %c0_35 = arith.constant 0 : index
      %c0_36 = arith.constant 0 : index
      %131 = vector.load %arg9[%c0_35, %c0_36] : memref<8x128xf32, #tpu.memory_space<vmem>>, vector<8x128xf32>
      tpu.vector_store %arg9[%c0_35, %c0_36], %130 {strides = array<i32>} : memref<8x128xf32, #tpu.memory_space<vmem>>, vector<8x128xf32>,
      %cst_37 = arith.constant 0.000000e+00 : f32
      %132 = vector.broadcast %cst_37 : f32 to vector<8x128xf32>
      %c0_38 = arith.constant 0 : index
      %c0_39 = arith.constant 0 : index
      %133 = vector.load %arg10[%c0_38, %c0_39] : memref<8x128xf32, #tpu.memory_space<vmem>>, vector<8x128xf32>
      tpu.vector_store %arg10[%c0_38, %c0_39], %132 {strides = array<i32>} : memref<8x128xf32, #tpu.memory_space<vmem>>, vector<8x128xf32>,
    } else {
    }
    %c0 = arith.constant 0 : index
    %c0_1 = arith.constant 0 : index
    %c0_2 = arith.constant 0 : index
    %3 = vector.load %arg2[%c0, %c0_1, %c0_2] : memref<4x8x16xf32, #tpu.memory_space<vmem>>, vector<4x8x16xf32>
    %4 = vector.shape_cast %3 : vector<4x8x16xf32> to vector<32x16xf32>
    %c0_3 = arith.constant 0 : index
    %c0_4 = arith.constant 0 : index
    %5 = vector.load %arg3[%c0_3, %c0_4] : memref<16x512xf32, #tpu.memory_space<vmem>>, vector<16x512xf32>
    %cst = arith.constant dense<0.000000e+00> : vector<32x512xf32>
    %6 = tpu.matmul %4, %5, %cst {dimension_numbers = #tpu.dot_dimension_numbers<[1], [0], [0], [1], [0, 0, 1, 1], [], []>} : vector<32x16xf32>, vector<16x512xf32>, vector<32x512xf32> -> vector<32x512xf32>
    %c0_5 = arith.constant 0 : index
    %c0_6 = arith.constant 0 : index
    %7 = vector.load %arg4[%c0_5, %c0_6] : memref<1x512xf32, #tpu.memory_space<vmem>>, vector<1x512xf32>
    %8 = vector.broadcast %7 : vector<1x512xf32> to vector<32x512xf32>
    %9 = arith.addf %6, %8 : vector<32x512xf32>
    %c0_7 = arith.constant 0 : index
    %c0_8 = arith.constant 0 : index
    %10 = vector.load %arg9[%c0_7, %c0_8] : memref<8x128xf32, #tpu.memory_space<vmem>>, vector<8x128xf32>
    %c0_9 = arith.constant 0 : index
    %c0_10 = arith.constant 0 : index
    %11 = vector.load %arg10[%c0_9, %c0_10] : memref<8x128xf32, #tpu.memory_space<vmem>>, vector<8x128xf32>
    %c0_11 = arith.constant 0 : index
    %c0_12 = arith.constant 0 : index
    %12 = vector.load %arg5[%c0_11, %c0_12] : memref<128x512xf32, #tpu.memory_space<vmem>>, vector<128x512xf32>
    %13 = vector.extract_strided_slice %9 {offsets = [0, 0], sizes = [8, 512], strides = [1, 1]} : vector<32x512xf32> to vector<8x512xf32>
    %cst_13 = arith.constant dense<0.000000e+00> : vector<8x512xf32>
    %14 = tpu.matmul %10, %12, %cst_13 {dimension_numbers = #tpu.dot_dimension_numbers<[1], [0], [0], [1], [0, 0, 1, 1], [], []>} : vector<8x128xf32>, vector<128x512xf32>, vector<8x512xf32> -> vector<8x512xf32>
    %15 = arith.addf %13, %14 : vector<8x512xf32>
    %16 = vector.extract_strided_slice %15 {offsets = [0, 0], sizes = [8, 128], strides = [1, 1]} : vector<8x512xf32> to vector<8x128xf32>
    %17 = arith.negf %16 : vector<8x128xf32>
    %18 = math.exp %17 : vector<8x128xf32>
    %cst_14 = arith.constant 1.000000e+00 : f32
    %19 = vector.broadcast %cst_14 : f32 to vector<8x128xf32>
    %20 = arith.addf %19, %18 : vector<8x128xf32>
    %21 = arith.divf %19, %20 : vector<8x128xf32>
    %22 = vector.extract_strided_slice %15 {offsets = [0, 128], sizes = [8, 128], strides = [1, 1]} : vector<8x512xf32> to vector<8x128xf32>
    %23 = arith.negf %22 : vector<8x128xf32>
    %24 = math.exp %23 : vector<8x128xf32>
    %cst_15 = arith.constant 1.000000e+00 : f32
    %25 = vector.broadcast %cst_15 : f32 to vector<8x128xf32>
    %26 = arith.addf %25, %24 : vector<8x128xf32>
    %27 = arith.divf %25, %26 : vector<8x128xf32>
    %28 = vector.extract_strided_slice %15 {offsets = [0, 256], sizes = [8, 128], strides = [1, 1]} : vector<8x512xf32> to vector<8x128xf32>
    %29 = math.tanh %28 : vector<8x128xf32>
    %30 = vector.extract_strided_slice %15 {offsets = [0, 384], sizes = [8, 128], strides = [1, 1]} : vector<8x512xf32> to vector<8x128xf32>
    %31 = arith.negf %30 : vector<8x128xf32>
    %32 = math.exp %31 : vector<8x128xf32>
    %cst_16 = arith.constant 1.000000e+00 : f32
    %33 = vector.broadcast %cst_16 : f32 to vector<8x128xf32>
    %34 = arith.addf %33, %32 : vector<8x128xf32>
    %35 = arith.divf %33, %34 : vector<8x128xf32>
    %36 = arith.mulf %27, %11 : vector<8x128xf32>
    %37 = arith.mulf %21, %29 : vector<8x128xf32>
    %38 = arith.addf %36, %37 : vector<8x128xf32>
    %39 = math.tanh %38 : vector<8x128xf32>
    %40 = arith.mulf %35, %39 : vector<8x128xf32>
    %41 = vector.extract_strided_slice %9 {offsets = [8, 0], sizes = [8, 512], strides = [1, 1]} : vector<32x512xf32> to vector<8x512xf32>
    %cst_17 = arith.constant dense<0.000000e+00> : vector<8x512xf32>
    %42 = tpu.matmul %40, %12, %cst_17 {dimension_numbers = #tpu.dot_dimension_numbers<[1], [0], [0], [1], [0, 0, 1, 1], [], []>} : vector<8x128xf32>, vector<128x512xf32>, vector<8x512xf32> -> vector<8x512xf32>
    %43 = arith.addf %41, %42 : vector<8x512xf32>
    %44 = vector.extract_strided_slice %43 {offsets = [0, 0], sizes = [8, 128], strides = [1, 1]} : vector<8x512xf32> to vector<8x128xf32>
    %45 = arith.negf %44 : vector<8x128xf32>
    %46 = math.exp %45 : vector<8x128xf32>
    %cst_18 = arith.constant 1.000000e+00 : f32
    %47 = vector.broadcast %cst_18 : f32 to vector<8x128xf32>
    %48 = arith.addf %47, %46 : vector<8x128xf32>
    %49 = arith.divf %47, %48 : vector<8x128xf32>
    %50 = vector.extract_strided_slice %43 {offsets = [0, 128], sizes = [8, 128], strides = [1, 1]} : vector<8x512xf32> to vector<8x128xf32>
    %51 = arith.negf %50 : vector<8x128xf32>
    %52 = math.exp %51 : vector<8x128xf32>
    %cst_19 = arith.constant 1.000000e+00 : f32
    %53 = vector.broadcast %cst_19 : f32 to vector<8x128xf32>
    %54 = arith.addf %53, %52 : vector<8x128xf32>
    %55 = arith.divf %53, %54 : vector<8x128xf32>
    %56 = vector.extract_strided_slice %43 {offsets = [0, 256], sizes = [8, 128], strides = [1, 1]} : vector<8x512xf32> to vector<8x128xf32>
    %57 = math.tanh %56 : vector<8x128xf32>
    %58 = vector.extract_strided_slice %43 {offsets = [0, 384], sizes = [8, 128], strides = [1, 1]} : vector<8x512xf32> to vector<8x128xf32>
    %59 = arith.negf %58 : vector<8x128xf32>
    %60 = math.exp %59 : vector<8x128xf32>
    %cst_20 = arith.constant 1.000000e+00 : f32
    %61 = vector.broadcast %cst_20 : f32 to vector<8x128xf32>
    %62 = arith.addf %61, %60 : vector<8x128xf32>
    %63 = arith.divf %61, %62 : vector<8x128xf32>
    %64 = arith.mulf %55, %38 : vector<8x128xf32>
    %65 = arith.mulf %49, %57 : vector<8x128xf32>
    %66 = arith.addf %64, %65 : vector<8x128xf32>
    %67 = math.tanh %66 : vector<8x128xf32>
    %68 = arith.mulf %63, %67 : vector<8x128xf32>
    %69 = vector.extract_strided_slice %9 {offsets = [16, 0], sizes = [8, 512], strides = [1, 1]} : vector<32x512xf32> to vector<8x512xf32>
    %cst_21 = arith.constant dense<0.000000e+00> : vector<8x512xf32>
    %70 = tpu.matmul %68, %12, %cst_21 {dimension_numbers = #tpu.dot_dimension_numbers<[1], [0], [0], [1], [0, 0, 1, 1], [], []>} : vector<8x128xf32>, vector<128x512xf32>, vector<8x512xf32> -> vector<8x512xf32>
    %71 = arith.addf %69, %70 : vector<8x512xf32>
    %72 = vector.extract_strided_slice %71 {offsets = [0, 0], sizes = [8, 128], strides = [1, 1]} : vector<8x512xf32> to vector<8x128xf32>
    %73 = arith.negf %72 : vector<8x128xf32>
    %74 = math.exp %73 : vector<8x128xf32>
    %cst_22 = arith.constant 1.000000e+00 : f32
    %75 = vector.broadcast %cst_22 : f32 to vector<8x128xf32>
    %76 = arith.addf %75, %74 : vector<8x128xf32>
    %77 = arith.divf %75, %76 : vector<8x128xf32>
    %78 = vector.extract_strided_slice %71 {offsets = [0, 128], sizes = [8, 128], strides = [1, 1]} : vector<8x512xf32> to vector<8x128xf32>
    %79 = arith.negf %78 : vector<8x128xf32>
    %80 = math.exp %79 : vector<8x128xf32>
    %cst_23 = arith.constant 1.000000e+00 : f32
    %81 = vector.broadcast %cst_23 : f32 to vector<8x128xf32>
    %82 = arith.addf %81, %80 : vector<8x128xf32>
    %83 = arith.divf %81, %82 : vector<8x128xf32>
    %84 = vector.extract_strided_slice %71 {offsets = [0, 256], sizes = [8, 128], strides = [1, 1]} : vector<8x512xf32> to vector<8x128xf32>
    %85 = math.tanh %84 : vector<8x128xf32>
    %86 = vector.extract_strided_slice %71 {offsets = [0, 384], sizes = [8, 128], strides = [1, 1]} : vector<8x512xf32> to vector<8x128xf32>
    %87 = arith.negf %86 : vector<8x128xf32>
    %88 = math.exp %87 : vector<8x128xf32>
    %cst_24 = arith.constant 1.000000e+00 : f32
    %89 = vector.broadcast %cst_24 : f32 to vector<8x128xf32>
    %90 = arith.addf %89, %88 : vector<8x128xf32>
    %91 = arith.divf %89, %90 : vector<8x128xf32>
    %92 = arith.mulf %83, %66 : vector<8x128xf32>
    %93 = arith.mulf %77, %85 : vector<8x128xf32>
    %94 = arith.addf %92, %93 : vector<8x128xf32>
    %95 = math.tanh %94 : vector<8x128xf32>
    %96 = arith.mulf %91, %95 : vector<8x128xf32>
    %97 = vector.extract_strided_slice %9 {offsets = [24, 0], sizes = [8, 512], strides = [1, 1]} : vector<32x512xf32> to vector<8x512xf32>
    %cst_25 = arith.constant dense<0.000000e+00> : vector<8x512xf32>
    %98 = tpu.matmul %96, %12, %cst_25 {dimension_numbers = #tpu.dot_dimension_numbers<[1], [0], [0], [1], [0, 0, 1, 1], [], []>} : vector<8x128xf32>, vector<128x512xf32>, vector<8x512xf32> -> vector<8x512xf32>
    %99 = arith.addf %97, %98 : vector<8x512xf32>
    %100 = vector.extract_strided_slice %99 {offsets = [0, 0], sizes = [8, 128], strides = [1, 1]} : vector<8x512xf32> to vector<8x128xf32>
    %101 = arith.negf %100 : vector<8x128xf32>
    %102 = math.exp %101 : vector<8x128xf32>
    %cst_26 = arith.constant 1.000000e+00 : f32
    %103 = vector.broadcast %cst_26 : f32 to vector<8x128xf32>
    %104 = arith.addf %103, %102 : vector<8x128xf32>
    %105 = arith.divf %103, %104 : vector<8x128xf32>
    %106 = vector.extract_strided_slice %99 {offsets = [0, 128], sizes = [8, 128], strides = [1, 1]} : vector<8x512xf32> to vector<8x128xf32>
    %107 = arith.negf %106 : vector<8x128xf32>
    %108 = math.exp %107 : vector<8x128xf32>
    %cst_27 = arith.constant 1.000000e+00 : f32
    %109 = vector.broadcast %cst_27 : f32 to vector<8x128xf32>
    %110 = arith.addf %109, %108 : vector<8x128xf32>
    %111 = arith.divf %109, %110 : vector<8x128xf32>
    %112 = vector.extract_strided_slice %99 {offsets = [0, 256], sizes = [8, 128], strides = [1, 1]} : vector<8x512xf32> to vector<8x128xf32>
    %113 = math.tanh %112 : vector<8x128xf32>
    %114 = vector.extract_strided_slice %99 {offsets = [0, 384], sizes = [8, 128], strides = [1, 1]} : vector<8x512xf32> to vector<8x128xf32>
    %115 = arith.negf %114 : vector<8x128xf32>
    %116 = math.exp %115 : vector<8x128xf32>
    %cst_28 = arith.constant 1.000000e+00 : f32
    %117 = vector.broadcast %cst_28 : f32 to vector<8x128xf32>
    %118 = arith.addf %117, %116 : vector<8x128xf32>
    %119 = arith.divf %117, %118 : vector<8x128xf32>
    %120 = arith.mulf %111, %94 : vector<8x128xf32>
    %121 = arith.mulf %105, %113 : vector<8x128xf32>
    %122 = arith.addf %120, %121 : vector<8x128xf32>
    %123 = math.tanh %122 : vector<8x128xf32>
    %124 = arith.mulf %119, %123 : vector<8x128xf32>
    %c0_29 = arith.constant 0 : index
    %c0_30 = arith.constant 0 : index
    %125 = vector.load %arg9[%c0_29, %c0_30] : memref<8x128xf32, #tpu.memory_space<vmem>>, vector<8x128xf32>
    tpu.vector_store %arg9[%c0_29, %c0_30], %124 {strides = array<i32>} : memref<8x128xf32, #tpu.memory_space<vmem>>, vector<8x128xf32>,
    %c0_31 = arith.constant 0 : index
    %c0_32 = arith.constant 0 : index
    %126 = vector.load %arg10[%c0_31, %c0_32] : memref<8x128xf32, #tpu.memory_space<vmem>>, vector<8x128xf32>
    tpu.vector_store %arg10[%c0_31, %c0_32], %122 {strides = array<i32>} : memref<8x128xf32, #tpu.memory_space<vmem>>, vector<8x128xf32>,
    %c1_i32 = arith.constant 1 : i32
    %127 = arith.cmpi eq, %arg1, %c1_i32 : i32
    %128 = arith.extui %127 : i1 to i32
    %c0_i32_33 = arith.constant 0 : i32
    %129 = arith.cmpi ne, %128, %c0_i32_33 : i32
    scf.if %129 {
      %c0_34 = arith.constant 0 : index
      %c0_35 = arith.constant 0 : index
      %130 = vector.load %arg9[%c0_34, %c0_35] : memref<8x128xf32, #tpu.memory_space<vmem>>, vector<8x128xf32>
      %c0_36 = arith.constant 0 : index
      %c0_37 = arith.constant 0 : index
      %131 = vector.load %arg6[%c0_36, %c0_37] : memref<128x128xf32, #tpu.memory_space<vmem>>, vector<128x128xf32>
      %cst_38 = arith.constant dense<0.000000e+00> : vector<8x128xf32>
      %132 = tpu.matmul %130, %131, %cst_38 {dimension_numbers = #tpu.dot_dimension_numbers<[1], [0], [0], [1], [0, 0, 1, 1], [], []>} : vector<8x128xf32>, vector<128x128xf32>, vector<8x128xf32> -> vector<8x128xf32>
      %c0_39 = arith.constant 0 : index
      %c0_40 = arith.constant 0 : index
      %133 = vector.load %arg7[%c0_39, %c0_40] : memref<1x128xf32, #tpu.memory_space<vmem>>, vector<1x128xf32>
      %134 = vector.broadcast %133 : vector<1x128xf32> to vector<8x128xf32>
      %135 = arith.addf %132, %134 : vector<8x128xf32>
      %c0_41 = arith.constant 0 : index
      %c0_42 = arith.constant 0 : index
      %136 = vector.load %arg8[%c0_41, %c0_42] : memref<8x128xf32, #tpu.memory_space<vmem>>, vector<8x128xf32>
      tpu.vector_store %arg8[%c0_41, %c0_42], %135 {strides = array<i32>} : memref<8x128xf32, #tpu.memory_space<vmem>>, vector<8x128xf32>,
    } else {
    }
    return
  }
  func.func @transform_0(%arg0: i32, %arg1: i32) -> (i32, i32, i32) {
    %c0_i32 = arith.constant 0 : i32
    %c0_i32_0 = arith.constant 0 : i32
    return %arg1, %arg0, %c0_i32 : i32, i32, i32
  }
  func.func @transform_1(%arg0: i32, %arg1: i32) -> (i32, i32) {
    %c0_i32 = arith.constant 0 : i32
    %c0_i32_0 = arith.constant 0 : i32
    %c0_i32_1 = arith.constant 0 : i32
    return %c0_i32, %c0_i32_0 : i32, i32
  }
  func.func @transform_2(%arg0: i32, %arg1: i32) -> (i32, i32) {
    %c0_i32 = arith.constant 0 : i32
    %c0_i32_0 = arith.constant 0 : i32
    %c0_i32_1 = arith.constant 0 : i32
    return %c0_i32, %c0_i32_0 : i32, i32
  }
  func.func @transform_3(%arg0: i32, %arg1: i32) -> (i32, i32) {
    %c0_i32 = arith.constant 0 : i32
    %c0_i32_0 = arith.constant 0 : i32
    %c0_i32_1 = arith.constant 0 : i32
    return %c0_i32, %c0_i32_0 : i32, i32
  }
  func.func @transform_4(%arg0: i32, %arg1: i32) -> (i32, i32) {
    %c0_i32 = arith.constant 0 : i32
    %c0_i32_0 = arith.constant 0 : i32
    %c0_i32_1 = arith.constant 0 : i32
    return %c0_i32, %c0_i32_0 : i32, i32
  }
  func.func @transform_5(%arg0: i32, %arg1: i32) -> (i32, i32) {
    %c0_i32 = arith.constant 0 : i32
    %c0_i32_0 = arith.constant 0 : i32
    %c0_i32_1 = arith.constant 0 : i32
    return %c0_i32, %c0_i32_0 : i32, i32
  }
  func.func @transform_6(%arg0: i32, %arg1: i32) -> (i32, i32) {
    %c0_i32 = arith.constant 0 : i32
    %c0_i32_0 = arith.constant 0 : i32
    return %arg0, %c0_i32 : i32, i32
  }
}

</mosaic_0001>

<llo_original>
// kernel: tpu_custom_call.1
$region0: #{tpu_custom_call.1}
  #allocation0 [shape = 'u32[]', space=smem, size = 0x4, offset = 0x4, fixed_abs, tag = 'smem constant byte address 0x4 - core index']
  #allocation1 [shape = 'u32[144,128]{1,0:T(1,128)}', space=vmem, size = 0x12000, scoped, tag = 'internal scratch']
  #allocation2 [shape = 'f32[8,128]{1,0:T(8,128)}', space=vmem, size = 0x1000, scoped, tag = 'scratch operand']
  #allocation3 [shape = 'f32[8,128]{1,0:T(8,128)}', space=vmem, size = 0x1000, scoped, tag = 'scratch operand']
  %s0 = inlined_call_operand.hbm [shape: f32[8,8,16], index: 0, kind: input, shape index: {}]
  %s1 = inlined_call_operand.hbm [shape: f32[16,512], index: 1, kind: input, shape index: {}]
  %s2 = inlined_call_operand.vmem [shape: f32[1,512], index: 2, kind: input, shape index: {}]
  %s3 = inlined_call_operand.hbm [shape: f32[128,512], index: 3, kind: input, shape index: {}]
  %s4 = inlined_call_operand.hbm [shape: f32[128,128], index: 4, kind: input, shape index: {}]
  %s5 = inlined_call_operand.vmem [shape: f32[1,128], index: 5, kind: input, shape index: {}]
  %s6 = inlined_call_operand.hbm [shape: f32[8,128], index: 6, kind: output, shape index: {}]
  %s7 = sld [smem:[#allocation0]]
  $region81: #{tpu_custom_call.1} parent=0
    _
  %s9 = ssub.s32 1, %s7
  %s10 = scalar_select 0, %s9, %s7
  $region1: #{tpu_custom_call.1} parent=0
    #allocation4 [shape = 'u8[32768]{0}', space=vmem, size = 0x8000, scoped, tag = 'input window, operand 0']
    #allocation5 [shape = 's32[2]{0}', space=sflag, size = 0x8, scoped, tag = 'scoped memory for tpu_custom_call.1']
    #allocation6 [shape = 's32[2]{0}', space=sflag, size = 0x8, scoped, tag = 'scoped memory for tpu_custom_call.1']
    #allocation7 [shape = 'u8[32768]{0}', space=vmem, size = 0x8000, scoped, tag = 'input window, operand 1, single buffered']
    #allocation8 [shape = 's32[1]{0}', space=sflag, size = 0x4, scoped, tag = 'scoped memory for tpu_custom_call.1']
    #allocation9 [shape = 'u8[262144]{0}', space=vmem, size = 0x40000, scoped, tag = 'input window, operand 3, single buffered']
    #allocation10 [shape = 'u8[65536]{0}', space=vmem, size = 0x10000, scoped, tag = 'input window, operand 4, single buffered']
    #allocation11 [shape = 's32[1]{0}', space=sflag, size = 0x4, scoped, tag = 'scoped memory for tpu_custom_call.1']
    #allocation12 [shape = 'u8[4096]{0}', space=vmem, size = 0x1000, scoped, tag = 'output window, operand 0, single buffered']
    %11 = vsyncpa [#allocation5], 0
    %s12 = scalar_lea.sflag [#allocation5], 1
    %13 = vsyncpa %s12, 0
    %14 = vsyncpa [#allocation8], 0
    %15 = vsyncpa [#allocation11], 0
    %16 = vsyncpa [#allocation6], 0
    loop: start=0, step=1, limit=4
    $region2: #{tpu_custom_call.1} parent=1 // loop_pre_header
      _
    $region3: #{tpu_custom_call.1} parent=1 // loop_header
      %s18 = sphi 0, %s22
      %p19 = scmp.ge.s32.totalorder %s18, 4
      %s25 = sphi 0, %s37
      %s26 = sphi 0, %s33
      %s27 = sphi 0, %s25
      %s28 = sphi 0, %s26
      %s29 = sphi 0, %s27
      %s30 = sphi 0, %s28
      %s42 = sphi 0, %s44
      %s45 = sphi 0, %s42
      %s46 = sphi 0, %s45
      %s62 = sphi 0, %s46
      %s66 = sphi 0, %s66
      %s68 = sphi 0, %s66
      %s69 = sphi 0, %s68
      %s83 = sphi 0, %s69
      %s87 = sphi 0, %s87
      %s89 = sphi 0, %s87
      %s90 = sphi 0, %s89
      %s104 = sphi 0, %s90
      %s108 = sphi 0, %s108
      %s110 = sphi 0, %s108
      %s111 = sphi 0, %s110
      %s125 = sphi 0, %s111
      %s129 = sphi 0, %s129
      %s131 = sphi 0, %s129
      %s132 = sphi 0, %s131
      %s146 = sphi 0, %s132
      %s150 = sphi 0, %s150
      %s152 = sphi 0, %s150
      %s153 = sphi 0, %s152
      %s167 = sphi 0, %s153
      %s173 = sphi 0, %s175
      %s176 = sphi 0, %s173
      %s177 = sphi 0, %s176
      %s193 = sphi 0, %s177
    $region4: #{tpu_custom_call.1} parent=1 // loop_header_branch
      %21 = sbr.rel (%p19) target = $region8
    $region5: #{tpu_custom_call.1} parent=1 // loop_body
      %s23 = ssub.s32 %s18, 1
      %s24 = ssub.s32 %s18, 2
      %s31 = sadd.s32 1, %s26
      %p32 = scmp.ge.s32.totalorder %s31, 2
      %s33 = scalar_select %p32, 0, %s31
      %s34 = sadd.s32 1, %s25
      %s35 = scalar_select %p32, %s34, %s25
      %p36 = scmp.ge.s32.totalorder %s35, 1
      %s37 = scalar_select %p36, 0, %s35
      %s38 = ssub.s32 %s26, %s33
      %s39 = ssub.s32 %s25, %s37
      %s40 = sor.u32 %s38, %s39
      %p41 = scmp.eq.s32.totalorder %s40, 0
      %s43 = sadd.s32 %s42, 1
      %s44 = scalar_select %p41, %s42, %s43
      %p47 = pneg %p41
      %p48 = scmp.eq.s32.totalorder %s18, 1
      %p49 = por %p47, %p48
      %p50 = scmp.ne.s32.totalorder %s42, %s45
      %p51 = scmp.eq.s32.totalorder %s18, 0
      %p52 = por %p50, %p51
      %p53 = scmp.ne.s32.totalorder %s42, %s45
      %p54 = scmp.eq.s32.totalorder %s23, 1
      %p55 = por %p53, %p54
      %p56 = scmp.ne.s32.totalorder %s45, %s46
      %p57 = scmp.eq.s32.totalorder %s23, 0
      %p58 = por %p56, %p57
      %p59 = scmp.ne.s32.totalorder %s45, %s46
      %p60 = scmp.eq.s32.totalorder %s24, 1
      %p61 = por %p59, %p60
      %p63 = scmp.ne.s32.totalorder %s46, %s62
      %p64 = scmp.eq.s32.totalorder %s24, 0
      %p65 = por %p63, %p64
      %s67 = sadd.s32 %s66, 1
      %p70 = scmp.eq.s32.totalorder %s18, 1
      %p71 = scmp.ne.s32.totalorder %s66, %s68
      %p72 = scmp.eq.s32.totalorder %s18, 0
      %p73 = por %p71, %p72
      %p74 = scmp.ne.s32.totalorder %s66, %s68
      %p75 = scmp.eq.s32.totalorder %s23, 1
      %p76 = por %p74, %p75
      %p77 = scmp.ne.s32.totalorder %s68, %s69
      %p78 = scmp.eq.s32.totalorder %s23, 0
      %p79 = por %p77, %p78
      %p80 = scmp.ne.s32.totalorder %s68, %s69
      %p81 = scmp.eq.s32.totalorder %s24, 1
      %p82 = por %p80, %p81
      %p84 = scmp.ne.s32.totalorder %s69, %s83
      %p85 = scmp.eq.s32.totalorder %s24, 0
      %p86 = por %p84, %p85
      %s88 = sadd.s32 %s87, 1
      %p91 = scmp.eq.s32.totalorder %s18, 1
      %p92 = scmp.ne.s32.totalorder %s87, %s89
      %p93 = scmp.eq.s32.totalorder %s18, 0
      %p94 = por %p92, %p93
      %p95 = scmp.ne.s32.totalorder %s87, %s89
      %p96 = scmp.eq.s32.totalorder %s23, 1
      %p97 = por %p95, %p96
      %p98 = scmp.ne.s32.totalorder %s89, %s90
      %p99 = scmp.eq.s32.totalorder %s23, 0
      %p100 = por %p98, %p99
      %p101 = scmp.ne.s32.totalorder %s89, %s90
      %p102 = scmp.eq.s32.totalorder %s24, 1
      %p103 = por %p101, %p102
      %p105 = scmp.ne.s32.totalorder %s90, %s104
      %p106 = scmp.eq.s32.totalorder %s24, 0
      %p107 = por %p105, %p106
      %s109 = sadd.s32 %s108, 1
      %p112 = scmp.eq.s32.totalorder %s18, 1
      %p113 = scmp.ne.s32.totalorder %s108, %s110
      %p114 = scmp.eq.s32.totalorder %s18, 0
      %p115 = por %p113, %p114
      %p116 = scmp.ne.s32.totalorder %s108, %s110
      %p117 = scmp.eq.s32.totalorder %s23, 1
      %p118 = por %p116, %p117
      %p119 = scmp.ne.s32.totalorder %s110, %s111
      %p120 = scmp.eq.s32.totalorder %s23, 0
      %p121 = por %p119, %p120
      %p122 = scmp.ne.s32.totalorder %s110, %s111
      %p123 = scmp.eq.s32.totalorder %s24, 1
      %p124 = por %p122, %p123
      %p126 = scmp.ne.s32.totalorder %s111, %s125
      %p127 = scmp.eq.s32.totalorder %s24, 0
      %p128 = por %p126, %p127
      %s130 = sadd.s32 %s129, 1
      %p133 = scmp.eq.s32.totalorder %s18, 1
      %p134 = scmp.ne.s32.totalorder %s129, %s131
      %p135 = scmp.eq.s32.totalorder %s18, 0
      %p136 = por %p134, %p135
      %p137 = scmp.ne.s32.totalorder %s129, %s131
      %p138 = scmp.eq.s32.totalorder %s23, 1
      %p139 = por %p137, %p138
      %p140 = scmp.ne.s32.totalorder %s131, %s132
      %p141 = scmp.eq.s32.totalorder %s23, 0
      %p142 = por %p140, %p141
      %p143 = scmp.ne.s32.totalorder %s131, %s132
      %p144 = scmp.eq.s32.totalorder %s24, 1
      %p145 = por %p143, %p144
      %p147 = scmp.ne.s32.totalorder %s132, %s146
      %p148 = scmp.eq.s32.totalorder %s24, 0
      %p149 = por %p147, %p148
      %s151 = sadd.s32 %s150, 1
      %p154 = scmp.eq.s32.totalorder %s18, 1
      %p155 = scmp.ne.s32.totalorder %s150, %s152
      %p156 = scmp.eq.s32.totalorder %s18, 0
      %p157 = por %p155, %p156
      %p158 = scmp.ne.s32.totalorder %s150, %s152
      %p159 = scmp.eq.s32.totalorder %s23, 1
      %p160 = por %p158, %p159
      %p161 = scmp.ne.s32.totalorder %s152, %s153
      %p162 = scmp.eq.s32.totalorder %s23, 0
      %p163 = por %p161, %p162
      %p164 = scmp.ne.s32.totalorder %s152, %s153
      %p165 = scmp.eq.s32.totalorder %s24, 1
      %p166 = por %p164, %p165
      %p168 = scmp.ne.s32.totalorder %s153, %s167
      %p169 = scmp.eq.s32.totalorder %s24, 0
      %p170 = por %p168, %p169
      %s171 = ssub.s32 %s25, %s37
      %p172 = scmp.eq.s32.totalorder %s171, 0
      %s174 = sadd.s32 %s173, 1
      %s175 = scalar_select %p172, %s173, %s174
      %p178 = pneg %p172
      %p179 = scmp.eq.s32.totalorder %s18, 1
      %p180 = por %p178, %p179
      %p181 = scmp.ne.s32.totalorder %s173, %s176
      %p182 = scmp.eq.s32.totalorder %s18, 0
      %p183 = por %p181, %p182
      %p184 = scmp.ne.s32.totalorder %s173, %s176
      %p185 = scmp.eq.s32.totalorder %s23, 1
      %p186 = por %p184, %p185
      %p187 = scmp.ne.s32.totalorder %s176, %s177
      %p188 = scmp.eq.s32.totalorder %s23, 0
      %p189 = por %p187, %p188
      %p190 = scmp.ne.s32.totalorder %s176, %s177
      %p191 = scmp.eq.s32.totalorder %s24, 1
      %p192 = por %p190, %p191
      %p194 = scmp.ne.s32.totalorder %s177, %s193
      %p195 = scmp.eq.s32.totalorder %s24, 0
      %p196 = por %p194, %p195
      %p197 = scmp.le.s32.totalorder 1, %s18
      %p198 = scmp.lt.s32.totalorder %s18, 3
      %p199 = pnand %p197, %p198
      %p200 = pneg %p199
      // Predicated region
      $region9: #{tpu_custom_call.1} parent=5 // pred_check
        _
      $region10: #{tpu_custom_call.1} parent=5 // pred_check_branch
        %202 = sbr.rel (%p199) target = $region12
      $region11: #{tpu_custom_call.1} parent=5 // pred_region
        %s203 = ssub.s32 %s18, 1
        // Predicated region
        $region13: #{tpu_custom_call.1} parent=11 // pred_check
          %p204 = pneg %p79
        $region14: #{tpu_custom_call.1} parent=11 // pred_check_branch
          %206 = sbr.rel (%p204) target = $region16
        $region15: #{tpu_custom_call.1} parent=11 // pred_region
          %s208 = ssub.s32 1024, 1024
          %209 = vsyncadd [#allocation8], %s208
          %s210 = sshll.u32 [#allocation7], 4
          %s211 = int_to_ptr.vmem [resolvable:$true] %s210
          %216 = dma.hbm_to_vmem [thread:$0]  %s1, 1024, %s211, [#allocation8], 512, 512, 32
        $region16: #{tpu_custom_call.1} parent=11 // pred_fallthru
          _
        // Predicated region
        $region17: #{tpu_custom_call.1} parent=11 // pred_check
          %p217 = pneg %p100
        $region18: #{tpu_custom_call.1} parent=11 // pred_check_branch
          %219 = sbr.rel (%p217) target = $region20
        $region19: #{tpu_custom_call.1} parent=11 // pred_region
          _
        $region20: #{tpu_custom_call.1} parent=11 // pred_fallthru
          _
        // Predicated region
        $region21: #{tpu_custom_call.1} parent=11 // pred_check
          %p220 = pneg %p121
        $region22: #{tpu_custom_call.1} parent=11 // pred_check_branch
          %222 = sbr.rel (%p220) target = $region24
        $region23: #{tpu_custom_call.1} parent=11 // pred_region
          %s224 = ssub.s32 8192, 8192
          %225 = vsyncadd [#allocation8], %s224
          %s226 = sshll.u32 [#allocation9], 4
          %s227 = int_to_ptr.vmem [resolvable:$true] %s226
          %232 = dma.hbm_to_vmem [thread:$0]  %s3, 8192, %s227, [#allocation8], 512, 512, 32
        $region24: #{tpu_custom_call.1} parent=11 // pred_fallthru
          _
        // Predicated region
        $region25: #{tpu_custom_call.1} parent=11 // pred_check
          %p233 = pneg %p142
        $region26: #{tpu_custom_call.1} parent=11 // pred_check_branch
          %235 = sbr.rel (%p233) target = $region28
        $region27: #{tpu_custom_call.1} parent=11 // pred_region
          %s237 = ssub.s32 2048, 2048
          %238 = vsyncadd [#allocation11], %s237
          %s239 = sshll.u32 [#allocation10], 4
          %s240 = int_to_ptr.vmem [resolvable:$true] %s239
          %245 = dma.hbm_to_vmem [thread:$0]  %s4, 2048, %s240, [#allocation11], 128, 128, 8
        $region28: #{tpu_custom_call.1} parent=11 // pred_fallthru
          _
        // Predicated region
        $region29: #{tpu_custom_call.1} parent=11 // pred_check
          %p246 = pneg %p163
        $region30: #{tpu_custom_call.1} parent=11 // pred_check_branch
          %248 = sbr.rel (%p246) target = $region32
        $region31: #{tpu_custom_call.1} parent=11 // pred_region
          _
        $region32: #{tpu_custom_call.1} parent=11 // pred_fallthru
          _
      $region12: #{tpu_custom_call.1} parent=5 // pred_fallthru
        _
      %p249 = scmp.lt.s32.totalorder %s18, 2
      // Predicated region
      $region33: #{tpu_custom_call.1} parent=5 // pred_check
        %p250 = pneg %p249
      $region34: #{tpu_custom_call.1} parent=5 // pred_check_branch
        %252 = sbr.rel (%p250) target = $region36
      $region35: #{tpu_custom_call.1} parent=5 // pred_region
        // Predicated region
        $region37: #{tpu_custom_call.1} parent=35 // pred_check
          %p253 = pneg %p52
        $region38: #{tpu_custom_call.1} parent=35 // pred_check_branch
          %255 = sbr.rel (%p253) target = $region40
        $region39: #{tpu_custom_call.1} parent=35 // pred_region
          %s256 = sand.u32 %s42, 1
          %s257 = scalar_lea.sflag [#allocation5], %s256
          %s258 = sand.u32 %s42, 1
          %s259 = smul.addr %s258, 32
          %s260 = scalar_lea.vmem [#allocation4], %s259
          %s261 = smul.u32 4, %s26
          %s263 = ssub.s32 512, 512
          %264 = vsyncadd %s257, %s263
          %s265 = sadd.s32 %s25, %s261
          %s266 = smul.addr %s265, 128
          %s267 = scalar_lea.hbm %s0, %s266
          %s268 = sshll.u32 %s260, 4
          %s269 = int_to_ptr.vmem [resolvable:$true] %s268
          %274 = dma.hbm_to_vmem [thread:$0]  %s267, 512, %s269, %s257, 128, 128, 8
        $region40: #{tpu_custom_call.1} parent=35 // pred_fallthru
          _
      $region36: #{tpu_custom_call.1} parent=5 // pred_fallthru
        _
      %p275 = scmp.le.s32.totalorder 1, %s18
      %p276 = scmp.lt.s32.totalorder %s18, 3
      %p277 = pnand %p275, %p276
      %p278 = pneg %p277
      // Predicated region
      $region41: #{tpu_custom_call.1} parent=5 // pred_check
        _
      $region42: #{tpu_custom_call.1} parent=5 // pred_check_branch
        %280 = sbr.rel (%p277) target = $region44
      $region43: #{tpu_custom_call.1} parent=5 // pred_region
        %s281 = ssub.s32 %s18, 1
        %s282 = sand.u32 %s45, 1
        %s283 = scalar_lea.sflag [#allocation5], %s282
        %s284 = sand.u32 %s45, 1
        %s285 = smul.addr %s284, 32
        %s286 = scalar_lea.vmem [#allocation4], %s285
        // Predicated region
        $region45: #{tpu_custom_call.1} parent=43 // pred_check
          %p287 = pneg %p58
        $region46: #{tpu_custom_call.1} parent=43 // pred_check_branch
          %289 = sbr.rel (%p287) target = $region48
        $region47: #{tpu_custom_call.1} parent=43 // pred_region
          %290 = dma.done %s283, 512
        $region48: #{tpu_custom_call.1} parent=43 // pred_fallthru
          _
        // Predicated region
        $region49: #{tpu_custom_call.1} parent=43 // pred_check
          %p291 = pneg %p79
        $region50: #{tpu_custom_call.1} parent=43 // pred_check_branch
          %293 = sbr.rel (%p291) target = $region52
        $region51: #{tpu_custom_call.1} parent=43 // pred_region
          %294 = dma.done [#allocation8], 1024
        $region52: #{tpu_custom_call.1} parent=43 // pred_fallthru
          _
        // Predicated region
        $region53: #{tpu_custom_call.1} parent=43 // pred_check
          %p295 = pneg %p121
        $region54: #{tpu_custom_call.1} parent=43 // pred_check_branch
          %297 = sbr.rel (%p295) target = $region56
        $region55: #{tpu_custom_call.1} parent=43 // pred_region
          %298 = dma.done [#allocation8], 8192
        $region56: #{tpu_custom_call.1} parent=43 // pred_fallthru
          _
        // Predicated region
        $region57: #{tpu_custom_call.1} parent=43 // pred_check
          %p299 = pneg %p142
        $region58: #{tpu_custom_call.1} parent=43 // pred_check_branch
          %301 = sbr.rel (%p299) target = $region60
        $region59: #{tpu_custom_call.1} parent=43 // pred_region
          %302 = dma.done [#allocation11], 2048
        $region60: #{tpu_custom_call.1} parent=43 // pred_fallthru
          _
        %s303 = sand.u32 %s45, 1
        %s304 = scalar_lea.sflag [#allocation5], %s303
        %s305 = sand.u32 %s45, 1
        %s306 = smul.addr %s305, 32
        %s307 = scalar_lea.vmem [#allocation4], %s306
        %p308 = pneg %p58
        %p309 = pneg %p55
        %p310 = pneg %p79
        %p311 = pneg %p76
        %p312 = pneg %p100
        %p313 = pneg %p97
        %p314 = pneg %p121
        %p315 = pneg %p118
        %p316 = pneg %p142
        %p317 = pneg %p139
        %p318 = pneg %p163
        %p319 = pneg %p160
        %p320 = pneg %p189
        %p321 = pneg %p186
        %s322 = smul.u32 4, %s28
        %p323 = scmp.eq.s32.totalorder %s28, 0
        // Predicated region
        $region61: #{tpu_custom_call.1} parent=43 // pred_check
          %p324 = pneg %p323
        $region62: #{tpu_custom_call.1} parent=43 // pred_check_branch
          %326 = sbr.rel (%p324) target = $region64
        $region63: #{tpu_custom_call.1} parent=43 // pred_region
          %327 = vst [vmem:[#allocation2] sm:$0xff] 0.0
          %328 = vst [vmem:[#allocation3] sm:$0xff] 0.0
        $region64: #{tpu_custom_call.1} parent=43 // pred_fallthru
          _
        %v329 = vld [vmem:[%s286] sm:$0xff]
        %v330 = vld [vmem:[%s286 + $0x8] sm:$0xff]
        %v331 = vld [vmem:[%s286 + $0x10] sm:$0xff]
        %v332 = vld [vmem:[%s286 + $0x18] sm:$0xff]
        %v333 = vld [vmem:[#allocation7] sm:$0xff]
        %v334 = vld [vmem:[#allocation7 + $0x8] sm:$0xff]
        %v335 = vld [vmem:[#allocation7 + $0x10] sm:$0xff]
        %v336 = vld [vmem:[#allocation7 + $0x18] sm:$0xff]
        %v337 = vld [vmem:[#allocation7 + $0x20] sm:$0xff]
        %v338 = vld [vmem:[#allocation7 + $0x28] sm:$0xff]
        %v339 = vld [vmem:[#allocation7 + $0x30] sm:$0xff]
        %v340 = vld [vmem:[#allocation7 + $0x38] sm:$0xff]
        %v341 = vld [vmem:[%s2] sm:$0xf]
        %v343 = vlaneseq
        %v344 = vshrl.u32 %v343, 7
        %v345 = vsub.s32 0, %v344
        %v346 = vrot.slane %v341, %v345
        %v347 = vlaneseq
        %v348 = vshrl.u32 %v347, 7
        %v349 = vsub.s32 1, %v348
        %v350 = vrot.slane %v341, %v349
        %v351 = vlaneseq
        %v352 = vshrl.u32 %v351, 7
        %v353 = vsub.s32 2, %v352
        %v354 = vrot.slane %v341, %v353
        %v355 = vlaneseq
        %v356 = vshrl.u32 %v355, 7
        %v357 = vsub.s32 3, %v356
        %v358 = vrot.slane %v341, %v357
        %vm363 = vcmask 130048
        %v365 = vsel %vm363, %v329, 0
        %v368 = vsel %vm363, %v330, 0
        %v371 = vsel %vm363, %v331, 0
        %v374 = vsel %vm363, %v332, 0
        %376 = vmatprep.subr.mxu0 %v334
        %377 = vmatpush1.msra.mxu0 %v333
        %378 = vmatprep.subr.mxu0 %v338
        %379 = vmatpush1.msra.mxu0 %v337
        %380 = vmatprep.subr.mxu0 0.0
        %381 = vmatpush1.msra.mxu0 0.0
        %382 = vmatprep.subr.mxu0 0.0
        %383 = vmatpush1.msra.mxu0 0.0
        %384 = vmatprep.subr.mxu0 0.0
        %385 = vmatpush1.msra.mxu0 0.0
        %386 = vmatprep.subr.mxu0 0.0
        %387 = vmatpush1.msra.mxu0 0.0
        %388 = vmatprep.subr.mxu0 0.0
        %389 = vmatpush1.msra.mxu0 0.0
        %390 = vmatprep.subr.mxu0 0.0
        %391 = vmatpush1.msra.mxu0 0.0
        %392 = vmatprep.subr.mxu0 0.0
        %393 = vmatpush1.msra.mxu0 0.0
        %394 = vmatprep.subr.mxu0 0.0
        %395 = vmatpush1.msra.mxu0 0.0
        %396 = vmatprep.subr.mxu0 0.0
        %397 = vmatpush1.msra.mxu0 0.0
        %398 = vmatprep.subr.mxu0 0.0
        %399 = vmatpush1.msra.mxu0 0.0
        %400 = vmatprep.subr.mxu0 0.0
        %401 = vmatpush1.msra.mxu0 0.0
        %402 = vmatprep.subr.mxu0 0.0
        %403 = vmatpush1.msra.mxu0 0.0
        %404 = vmatprep.subr.mxu0 0.0
        %405 = vmatpush1.msra.mxu0 0.0
        %406 = vmatprep.subr.mxu0 0.0
        %407 = vmatpush1.msra.mxu0 0.0
        %408 = vmatprep.subr.mxu0 0.0
        %409 = vmatpush1.msra.mxu0 0.0
        %410 = vmatprep.subr.mxu0 0.0
        %411 = vmatpush1.msra.mxu0 0.0
        %412 = vmatprep.subr.mxu0 0.0
        %413 = vmatpush1.msra.mxu0 0.0
        %414 = vmatprep.subr.mxu0 0.0
        %415 = vmatpush1.msra.mxu0 0.0
        %416 = vmatprep.subr.mxu0 0.0
        %417 = vmatpush1.msra.mxu0 0.0
        %418 = vmatprep.subr.mxu0 0.0
        %419 = vmatpush1.msra.mxu0 0.0
        %420 = vmatprep.subr.mxu0 0.0
        %421 = vmatpush1.msra.mxu0 0.0
        %422 = vmatprep.subr.mxu0 0.0
        %423 = vmatpush1.msra.mxu0 0.0
        %424 = vmatprep.subr.mxu0 0.0
        %425 = vmatpush1.msra.mxu0 0.0
        %426 = vmatprep.subr.mxu0 0.0
        %427 = vmatpush1.msra.mxu0 0.0
        %428 = vmatprep.subr.mxu0 0.0
        %429 = vmatpush1.msra.mxu0 0.0
        %430 = vmatprep.subr.mxu0 0.0
        %431 = vmatpush1.msra.mxu0 0.0
        %432 = vmatprep.subr.mxu0 0.0
        %433 = vmatpush1.msra.mxu0 0.0
        %434 = vmatprep.subr.mxu0 0.0
        %435 = vmatpush1.msra.mxu0 0.0
        %436 = vmatprep.subr.mxu0 0.0
        %437 = vmatpush1.msra.mxu0 0.0
        %438 = vmatprep.subr.mxu0 0.0
        %439 = vmatpush1.msra.mxu0 0.0
        %440 = vmatprep.mubr.f32.mxu0 0.0
        %441 = vmatmul.mubr.f32.gmra.mrb[0].mxu0 %v365
        %v442 = vpop.f32.mrb[0].mxu0
        %v443 = vadd.f32 %v346, %v442
        %v444 = vpop.f32.mrb[0].mxu0
        %v445 = vadd.f32 %v350, %v444
        %446 = vmatprep.mubr.f32.mxu0 0.0
        %447 = vmatmul.mubr.f32.gmra.mrb[0].mxu0 %v368
        %v448 = vpop.f32.mrb[0].mxu0
        %v449 = vadd.f32 %v346, %v448
        %v450 = vpop.f32.mrb[0].mxu0
        %v451 = vadd.f32 %v350, %v450
        %452 = vmatprep.mubr.f32.mxu0 0.0
        %453 = vmatmul.mubr.f32.gmra.mrb[0].mxu0 %v371
        %v454 = vpop.f32.mrb[0].mxu0
        %v455 = vadd.f32 %v346, %v454
        %v456 = vpop.f32.mrb[0].mxu0
        %v457 = vadd.f32 %v350, %v456
        %458 = vmatprep.mubr.f32.mxu0 0.0
        %459 = vmatmul.mubr.f32.gmra.mrb[0].mxu0 %v374
        %v460 = vpop.f32.mrb[0].mxu0
        %v461 = vadd.f32 %v346, %v460
        %v462 = vpop.f32.mrb[0].mxu0
        %v463 = vadd.f32 %v350, %v462
        %464 = vdwg.mxu0
        %465 = vmatprep.subr.mxu0 %v336
        %466 = vmatpush1.msra.mxu0 %v335
        %467 = vmatprep.subr.mxu0 %v340
        %468 = vmatpush1.msra.mxu0 %v339
        %469 = vmatprep.subr.mxu0 0.0
        %470 = vmatpush1.msra.mxu0 0.0
        %471 = vmatprep.subr.mxu0 0.0
        %472 = vmatpush1.msra.mxu0 0.0
        %473 = vmatprep.subr.mxu0 0.0
        %474 = vmatpush1.msra.mxu0 0.0
        %475 = vmatprep.subr.mxu0 0.0
        %476 = vmatpush1.msra.mxu0 0.0
        %477 = vmatprep.subr.mxu0 0.0
        %478 = vmatpush1.msra.mxu0 0.0
        %479 = vmatprep.subr.mxu0 0.0
        %480 = vmatpush1.msra.mxu0 0.0
        %481 = vmatprep.subr.mxu0 0.0
        %482 = vmatpush1.msra.mxu0 0.0
        %483 = vmatprep.subr.mxu0 0.0
        %484 = vmatpush1.msra.mxu0 0.0
        %485 = vmatprep.subr.mxu0 0.0
        %486 = vmatpush1.msra.mxu0 0.0
        %487 = vmatprep.subr.mxu0 0.0
        %488 = vmatpush1.msra.mxu0 0.0
        %489 = vmatprep.subr.mxu0 0.0
        %490 = vmatpush1.msra.mxu0 0.0
        %491 = vmatprep.subr.mxu0 0.0
        %492 = vmatpush1.msra.mxu0 0.0
        %493 = vmatprep.subr.mxu0 0.0
        %494 = vmatpush1.msra.mxu0 0.0
        %495 = vmatprep.subr.mxu0 0.0
        %496 = vmatpush1.msra.mxu0 0.0
        %497 = vmatprep.subr.mxu0 0.0
        %498 = vmatpush1.msra.mxu0 0.0
        %499 = vmatprep.subr.mxu0 0.0
        %500 = vmatpush1.msra.mxu0 0.0
        %501 = vmatprep.subr.mxu0 0.0
        %502 = vmatpush1.msra.mxu0 0.0
        %503 = vmatprep.subr.mxu0 0.0
        %504 = vmatpush1.msra.mxu0 0.0
        %505 = vmatprep.subr.mxu0 0.0
        %506 = vmatpush1.msra.mxu0 0.0
        %507 = vmatprep.subr.mxu0 0.0
        %508 = vmatpush1.msra.mxu0 0.0
        %509 = vmatprep.subr.mxu0 0.0
        %510 = vmatpush1.msra.mxu0 0.0
        %511 = vmatprep.subr.mxu0 0.0
        %512 = vmatpush1.msra.mxu0 0.0
        %513 = vmatprep.subr.mxu0 0.0
        %514 = vmatpush1.msra.mxu0 0.0
        %515 = vmatprep.subr.mxu0 0.0
        %516 = vmatpush1.msra.mxu0 0.0
        %517 = vmatprep.subr.mxu0 0.0
        %518 = vmatpush1.msra.mxu0 0.0
        %519 = vmatprep.subr.mxu0 0.0
        %520 = vmatpush1.msra.mxu0 0.0
        %521 = vmatprep.subr.mxu0 0.0
        %522 = vmatpush1.msra.mxu0 0.0
        %523 = vmatprep.subr.mxu0 0.0
        %524 = vmatpush1.msra.mxu0 0.0
        %525 = vmatprep.subr.mxu0 0.0
        %526 = vmatpush1.msra.mxu0 0.0
        %527 = vmatprep.subr.mxu0 0.0
        %528 = vmatpush1.msra.mxu0 0.0
        %529 = vmatprep.mubr.f32.mxu0 0.0
        %530 = vmatmul.mubr.f32.gmra.mrb[0].mxu0 %v365
        %v531 = vpop.f32.mrb[0].mxu0
        %v532 = vadd.f32 %v354, %v531
        %v533 = vpop.f32.mrb[0].mxu0
        %v534 = vadd.f32 %v358, %v533
        %535 = vmatprep.mubr.f32.mxu0 0.0
        %536 = vmatmul.mubr.f32.gmra.mrb[0].mxu0 %v368
        %v537 = vpop.f32.mrb[0].mxu0
        %v538 = vadd.f32 %v354, %v537
        %v539 = vpop.f32.mrb[0].mxu0
        %v540 = vadd.f32 %v358, %v539
        %541 = vmatprep.mubr.f32.mxu0 0.0
        %542 = vmatmul.mubr.f32.gmra.mrb[0].mxu0 %v371
        %v543 = vpop.f32.mrb[0].mxu0
        %v544 = vadd.f32 %v354, %v543
        %v545 = vpop.f32.mrb[0].mxu0
        %v546 = vadd.f32 %v358, %v545
        %547 = vmatprep.mubr.f32.mxu0 0.0
        %548 = vmatmul.mubr.f32.gmra.mrb[0].mxu0 %v374
        %v549 = vpop.f32.mrb[0].mxu0
        %v550 = vadd.f32 %v354, %v549
        %v551 = vpop.f32.mrb[0].mxu0
        %v552 = vadd.f32 %v358, %v551
        %553 = vdwg.mxu0
        %v554 = vld [vmem:[#allocation2] sm:$0xff]
        %v555 = vld [vmem:[#allocation3] sm:$0xff]
        %v556 = vld [vmem:[#allocation9] sm:$0xff]
        %v557 = vld [vmem:[#allocation9 + $0x8] sm:$0xff]
        %v558 = vld [vmem:[#allocation9 + $0x10] sm:$0xff]
        %v559 = vld [vmem:[#allocation9 + $0x18] sm:$0xff]
        %v560 = vld [vmem:[#allocation9 + $0x20] sm:$0xff]
        %v561 = vld [vmem:[#allocation9 + $0x28] sm:$0xff]
        %v562 = vld [vmem:[#allocation9 + $0x30] sm:$0xff]
        %v563 = vld [vmem:[#allocation9 + $0x38] sm:$0xff]
        %v564 = vld [vmem:[#allocation9 + $0x40] sm:$0xff]
        %v565 = vld [vmem:[#allocation9 + $0x48] sm:$0xff]
        %v566 = vld [vmem:[#allocation9 + $0x50] sm:$0xff]
        %v567 = vld [vmem:[#allocation9 + $0x58] sm:$0xff]
        %v568 = vld [vmem:[#allocation9 + $0x60] sm:$0xff]
        %v569 = vld [vmem:[#allocation9 + $0x68] sm:$0xff]
        %v570 = vld [vmem:[#allocation9 + $0x70] sm:$0xff]
        %v571 = vld [vmem:[#allocation9 + $0x78] sm:$0xff]
        %v572 = vld [vmem:[#allocation9 + $0x80] sm:$0xff]
        %v573 = vld [vmem:[#allocation9 + $0x88] sm:$0xff]
        %v574 = vld [vmem:[#allocation9 + $0x90] sm:$0xff]
        %v575 = vld [vmem:[#allocation9 + $0x98] sm:$0xff]
        %v576 = vld [vmem:[#allocation9 + $0xa0] sm:$0xff]
        %v577 = vld [vmem:[#allocation9 + $0xa8] sm:$0xff]
        %v578 = vld [vmem:[#allocation9 + $0xb0] sm:$0xff]
        %v579 = vld [vmem:[#allocation9 + $0xb8] sm:$0xff]
        %v580 = vld [vmem:[#allocation9 + $0xc0] sm:$0xff]
        %v581 = vld [vmem:[#allocation9 + $0xc8] sm:$0xff]
        %v582 = vld [vmem:[#allocation9 + $0xd0] sm:$0xff]
        %v583 = vld [vmem:[#allocation9 + $0xd8] sm:$0xff]
        %v584 = vld [vmem:[#allocation9 + $0xe0] sm:$0xff]
        %v585 = vld [vmem:[#allocation9 + $0xe8] sm:$0xff]
        %v586 = vld [vmem:[#allocation9 + $0xf0] sm:$0xff]
        %v587 = vld [vmem:[#allocation9 + $0xf8] sm:$0xff]
        %v588 = vld [vmem:[#allocation9 + $0x100] sm:$0xff]
        %v589 = vld [vmem:[#allocation9 + $0x108] sm:$0xff]
        %v590 = vld [vmem:[#allocation9 + $0x110] sm:$0xff]
        %v591 = vld [vmem:[#allocation9 + $0x118] sm:$0xff]
        %v592 = vld [vmem:[#allocation9 + $0x120] sm:$0xff]
        %v593 = vld [vmem:[#allocation9 + $0x128] sm:$0xff]
        %v594 = vld [vmem:[#allocation9 + $0x130] sm:$0xff]
        %v595 = vld [vmem:[#allocation9 + $0x138] sm:$0xff]
        %v596 = vld [vmem:[#allocation9 + $0x140] sm:$0xff]
        %v597 = vld [vmem:[#allocation9 + $0x148] sm:$0xff]
        %v598 = vld [vmem:[#allocation9 + $0x150] sm:$0xff]
        %v599 = vld [vmem:[#allocation9 + $0x158] sm:$0xff]
        %v600 = vld [vmem:[#allocation9 + $0x160] sm:$0xff]
        %v601 = vld [vmem:[#allocation9 + $0x168] sm:$0xff]
        %v602 = vld [vmem:[#allocation9 + $0x170] sm:$0xff]
        %v603 = vld [vmem:[#allocation9 + $0x178] sm:$0xff]
        %v604 = vld [vmem:[#allocation9 + $0x180] sm:$0xff]
        %v605 = vld [vmem:[#allocation9 + $0x188] sm:$0xff]
        %v606 = vld [vmem:[#allocation9 + $0x190] sm:$0xff]
        %v607 = vld [vmem:[#allocation9 + $0x198] sm:$0xff]
        %v608 = vld [vmem:[#allocation9 + $0x1a0] sm:$0xff]
        %v609 = vld [vmem:[#allocation9 + $0x1a8] sm:$0xff]
        %v610 = vld [vmem:[#allocation9 + $0x1b0] sm:$0xff]
        %v611 = vld [vmem:[#allocation9 + $0x1b8] sm:$0xff]
        %v612 = vld [vmem:[#allocation9 + $0x1c0] sm:$0xff]
        %v613 = vld [vmem:[#allocation9 + $0x1c8] sm:$0xff]
        %v614 = vld [vmem:[#allocation9 + $0x1d0] sm:$0xff]
        %v615 = vld [vmem:[#allocation9 + $0x1d8] sm:$0xff]
        %v616 = vld [vmem:[#allocation9 + $0x1e0] sm:$0xff]
        %v617 = vld [vmem:[#allocation9 + $0x1e8] sm:$0xff]
        %v618 = vld [vmem:[#allocation9 + $0x1f0] sm:$0xff]
        %v619 = vld [vmem:[#allocation9 + $0x1f8] sm:$0xff]
        %620 = vmatprep.subr.mxu0 %v557
        %621 = vmatpush1.msra.mxu0 %v556
        %622 = vmatprep.subr.mxu0 %v561
        %623 = vmatpush1.msra.mxu0 %v560
        %624 = vmatprep.subr.mxu0 %v565
        %625 = vmatpush1.msra.mxu0 %v564
        %626 = vmatprep.subr.mxu0 %v569
        %627 = vmatpush1.msra.mxu0 %v568
        %628 = vmatprep.subr.mxu0 %v573
        %629 = vmatpush1.msra.mxu0 %v572
        %630 = vmatprep.subr.mxu0 %v577
        %631 = vmatpush1.msra.mxu0 %v576
        %632 = vmatprep.subr.mxu0 %v581
        %633 = vmatpush1.msra.mxu0 %v580
        %634 = vmatprep.subr.mxu0 %v585
        %635 = vmatpush1.msra.mxu0 %v584
        %636 = vmatprep.subr.mxu0 %v589
        %637 = vmatpush1.msra.mxu0 %v588
        %638 = vmatprep.subr.mxu0 %v593
        %639 = vmatpush1.msra.mxu0 %v592
        %640 = vmatprep.subr.mxu0 %v597
        %641 = vmatpush1.msra.mxu0 %v596
        %642 = vmatprep.subr.mxu0 %v601
        %643 = vmatpush1.msra.mxu0 %v600
        %644 = vmatprep.subr.mxu0 %v605
        %645 = vmatpush1.msra.mxu0 %v604
        %646 = vmatprep.subr.mxu0 %v609
        %647 = vmatpush1.msra.mxu0 %v608
        %648 = vmatprep.subr.mxu0 %v613
        %649 = vmatpush1.msra.mxu0 %v612
        %650 = vmatprep.subr.mxu0 %v617
        %651 = vmatpush1.msra.mxu0 %v616
        %652 = vmatprep.subr.mxu0 0.0
        %653 = vmatpush1.msra.mxu0 0.0
        %654 = vmatprep.subr.mxu0 0.0
        %655 = vmatpush1.msra.mxu0 0.0
        %656 = vmatprep.subr.mxu0 0.0
        %657 = vmatpush1.msra.mxu0 0.0
        %658 = vmatprep.subr.mxu0 0.0
        %659 = vmatpush1.msra.mxu0 0.0
        %660 = vmatprep.subr.mxu0 0.0
        %661 = vmatpush1.msra.mxu0 0.0
        %662 = vmatprep.subr.mxu0 0.0
        %663 = vmatpush1.msra.mxu0 0.0
        %664 = vmatprep.subr.mxu0 0.0
        %665 = vmatpush1.msra.mxu0 0.0
        %666 = vmatprep.subr.mxu0 0.0
        %667 = vmatpush1.msra.mxu0 0.0
        %668 = vmatprep.subr.mxu0 0.0
        %669 = vmatpush1.msra.mxu0 0.0
        %670 = vmatprep.subr.mxu0 0.0
        %671 = vmatpush1.msra.mxu0 0.0
        %672 = vmatprep.subr.mxu0 0.0
        %673 = vmatpush1.msra.mxu0 0.0
        %674 = vmatprep.subr.mxu0 0.0
        %675 = vmatpush1.msra.mxu0 0.0
        %676 = vmatprep.subr.mxu0 0.0
        %677 = vmatpush1.msra.mxu0 0.0
        %678 = vmatprep.subr.mxu0 0.0
        %679 = vmatpush1.msra.mxu0 0.0
        %680 = vmatprep.subr.mxu0 0.0
        %681 = vmatpush1.msra.mxu0 0.0
        %682 = vmatprep.subr.mxu0 0.0
        %683 = vmatpush1.msra.mxu0 0.0
        %684 = vmatprep.mubr.f32.mxu0 0.0
        %685 = vmatmul.mubr.f32.gmra.mrb[0].mxu0 %v554
        %v686 = vpop.f32.mrb[0].mxu0
        %v687 = vadd.f32 0.0, %v686
        %v688 = vpop.f32.mrb[0].mxu0
        %v689 = vadd.f32 0.0, %v688
        %690 = vdwg.mxu0
        %691 = vmatprep.subr.mxu0 %v559
        %692 = vmatpush1.msra.mxu0 %v558
        %693 = vmatprep.subr.mxu0 %v563
        %694 = vmatpush1.msra.mxu0 %v562
        %695 = vmatprep.subr.mxu0 %v567
        %696 = vmatpush1.msra.mxu0 %v566
        %697 = vmatprep.subr.mxu0 %v571
        %698 = vmatpush1.msra.mxu0 %v570
        %699 = vmatprep.subr.mxu0 %v575
        %700 = vmatpush1.msra.mxu0 %v574
        %701 = vmatprep.subr.mxu0 %v579
        %702 = vmatpush1.msra.mxu0 %v578
        %703 = vmatprep.subr.mxu0 %v583
        %704 = vmatpush1.msra.mxu0 %v582
        %705 = vmatprep.subr.mxu0 %v587
        %706 = vmatpush1.msra.mxu0 %v586
        %707 = vmatprep.subr.mxu0 %v591
        %708 = vmatpush1.msra.mxu0 %v590
        %709 = vmatprep.subr.mxu0 %v595
        %710 = vmatpush1.msra.mxu0 %v594
        %711 = vmatprep.subr.mxu0 %v599
        %712 = vmatpush1.msra.mxu0 %v598
        %713 = vmatprep.subr.mxu0 %v603
        %714 = vmatpush1.msra.mxu0 %v602
        %715 = vmatprep.subr.mxu0 %v607
        %716 = vmatpush1.msra.mxu0 %v606
        %717 = vmatprep.subr.mxu0 %v611
        %718 = vmatpush1.msra.mxu0 %v610
        %719 = vmatprep.subr.mxu0 %v615
        %720 = vmatpush1.msra.mxu0 %v614
        %721 = vmatprep.subr.mxu0 %v619
        %722 = vmatpush1.msra.mxu0 %v618
        %723 = vmatprep.subr.mxu0 0.0
        %724 = vmatpush1.msra.mxu0 0.0
        %725 = vmatprep.subr.mxu0 0.0
        %726 = vmatpush1.msra.mxu0 0.0
        %727 = vmatprep.subr.mxu0 0.0
        %728 = vmatpush1.msra.mxu0 0.0
        %729 = vmatprep.subr.mxu0 0.0
        %730 = vmatpush1.msra.mxu0 0.0
        %731 = vmatprep.subr.mxu0 0.0
        %732 = vmatpush1.msra.mxu0 0.0
        %733 = vmatprep.subr.mxu0 0.0
        %734 = vmatpush1.msra.mxu0 0.0
        %735 = vmatprep.subr.mxu0 0.0
        %736 = vmatpush1.msra.mxu0 0.0
        %737 = vmatprep.subr.mxu0 0.0
        %738 = vmatpush1.msra.mxu0 0.0
        %739 = vmatprep.subr.mxu0 0.0
        %740 = vmatpush1.msra.mxu0 0.0
        %741 = vmatprep.subr.mxu0 0.0
        %742 = vmatpush1.msra.mxu0 0.0
        %743 = vmatprep.subr.mxu0 0.0
        %744 = vmatpush1.msra.mxu0 0.0
        %745 = vmatprep.subr.mxu0 0.0
        %746 = vmatpush1.msra.mxu0 0.0
        %747 = vmatprep.subr.mxu0 0.0
        %748 = vmatpush1.msra.mxu0 0.0
        %749 = vmatprep.subr.mxu0 0.0
        %750 = vmatpush1.msra.mxu0 0.0
        %751 = vmatprep.subr.mxu0 0.0
        %752 = vmatpush1.msra.mxu0 0.0
        %753 = vmatprep.subr.mxu0 0.0
        %754 = vmatpush1.msra.mxu0 0.0
        %755 = vmatprep.mubr.f32.mxu0 0.0
        %756 = vmatmul.mubr.f32.gmra.mrb[0].mxu0 %v554
        %v757 = vpop.f32.mrb[0].mxu0
        %v758 = vadd.f32 0.0, %v757
        %v759 = vpop.f32.mrb[0].mxu0
        %v760 = vadd.f32 0.0, %v759
        %761 = vdwg.mxu0
        %v762 = vadd.f32 %v443, %v687
        %v763 = vadd.f32 %v445, %v689
        %v764 = vadd.f32 %v532, %v758
        %v765 = vadd.f32 %v534, %v760
        %v766 = vxor.u32 %v762, 2147483648
        %v767 = vmul.f32 %v766, 1.442695
        %v768 = vpow.pop %v767
        %v769 = vadd.f32 %v768, 1.0
        %v770 = vrcp.pop %v769
        %v771 = vmul.f32 1.0, %v770
        %v772 = vxor.u32 %v763, 2147483648
        %v773 = vmul.f32 %v772, 1.442695
        %v774 = vpow.pop %v773
        %v775 = vadd.f32 %v774, 1.0
        %v776 = vrcp.pop %v775
        %v777 = vmul.f32 1.0, %v776
        %v778 = vtanh.pop %v764
        %v779 = vxor.u32 %v765, 2147483648
        %v780 = vmul.f32 %v779, 1.442695
        %v781 = vpow.pop %v780
        %v782 = vadd.f32 %v781, 1.0
        %v783 = vrcp.pop %v782
        %v784 = vmul.f32 1.0, %v783
        %v785 = vmul.f32 %v777, %v555
        %v786 = vmul.f32 %v771, %v778
        %v787 = vadd.f32 %v785, %v786
        %v788 = vtanh.pop %v787
        %v789 = vmul.f32 %v784, %v788
        %790 = vmatprep.subr.mxu0 %v557
        %791 = vmatpush1.msra.mxu0 %v556
        %792 = vmatprep.subr.mxu0 %v561
        %793 = vmatpush1.msra.mxu0 %v560
        %794 = vmatprep.subr.mxu0 %v565
        %795 = vmatpush1.msra.mxu0 %v564
        %796 = vmatprep.subr.mxu0 %v569
        %797 = vmatpush1.msra.mxu0 %v568
        %798 = vmatprep.subr.mxu0 %v573
        %799 = vmatpush1.msra.mxu0 %v572
        %800 = vmatprep.subr.mxu0 %v577
        %801 = vmatpush1.msra.mxu0 %v576
        %802 = vmatprep.subr.mxu0 %v581
        %803 = vmatpush1.msra.mxu0 %v580
        %804 = vmatprep.subr.mxu0 %v585
        %805 = vmatpush1.msra.mxu0 %v584
        %806 = vmatprep.subr.mxu0 %v589
        %807 = vmatpush1.msra.mxu0 %v588
        %808 = vmatprep.subr.mxu0 %v593
        %809 = vmatpush1.msra.mxu0 %v592
        %810 = vmatprep.subr.mxu0 %v597
        %811 = vmatpush1.msra.mxu0 %v596
        %812 = vmatprep.subr.mxu0 %v601
        %813 = vmatpush1.msra.mxu0 %v600
        %814 = vmatprep.subr.mxu0 %v605
        %815 = vmatpush1.msra.mxu0 %v604
        %816 = vmatprep.subr.mxu0 %v609
        %817 = vmatpush1.msra.mxu0 %v608
        %818 = vmatprep.subr.mxu0 %v613
        %819 = vmatpush1.msra.mxu0 %v612
        %820 = vmatprep.subr.mxu0 %v617
        %821 = vmatpush1.msra.mxu0 %v616
        %822 = vmatprep.subr.mxu0 0.0
        %823 = vmatpush1.msra.mxu0 0.0
        %824 = vmatprep.subr.mxu0 0.0
        %825 = vmatpush1.msra.mxu0 0.0
        %826 = vmatprep.subr.mxu0 0.0
        %827 = vmatpush1.msra.mxu0 0.0
        %828 = vmatprep.subr.mxu0 0.0
        %829 = vmatpush1.msra.mxu0 0.0
        %830 = vmatprep.subr.mxu0 0.0
        %831 = vmatpush1.msra.mxu0 0.0
        %832 = vmatprep.subr.mxu0 0.0
        %833 = vmatpush1.msra.mxu0 0.0
        %834 = vmatprep.subr.mxu0 0.0
        %835 = vmatpush1.msra.mxu0 0.0
        %836 = vmatprep.subr.mxu0 0.0
        %837 = vmatpush1.msra.mxu0 0.0
        %838 = vmatprep.subr.mxu0 0.0
        %839 = vmatpush1.msra.mxu0 0.0
        %840 = vmatprep.subr.mxu0 0.0
        %841 = vmatpush1.msra.mxu0 0.0
        %842 = vmatprep.subr.mxu0 0.0
        %843 = vmatpush1.msra.mxu0 0.0
        %844 = vmatprep.subr.mxu0 0.0
        %845 = vmatpush1.msra.mxu0 0.0
        %846 = vmatprep.subr.mxu0 0.0
        %847 = vmatpush1.msra.mxu0 0.0
        %848 = vmatprep.subr.mxu0 0.0
        %849 = vmatpush1.msra.mxu0 0.0
        %850 = vmatprep.subr.mxu0 0.0
        %851 = vmatpush1.msra.mxu0 0.0
        %852 = vmatprep.subr.mxu0 0.0
        %853 = vmatpush1.msra.mxu0 0.0
        %854 = vmatprep.mubr.f32.mxu0 0.0
        %855 = vmatmul.mubr.f32.gmra.mrb[0].mxu0 %v789
        %v856 = vpop.f32.mrb[0].mxu0
        %v857 = vadd.f32 0.0, %v856
        %v858 = vpop.f32.mrb[0].mxu0
        %v859 = vadd.f32 0.0, %v858
        %860 = vdwg.mxu0
        %861 = vmatprep.subr.mxu0 %v559
        %862 = vmatpush1.msra.mxu0 %v558
        %863 = vmatprep.subr.mxu0 %v563
        %864 = vmatpush1.msra.mxu0 %v562
        %865 = vmatprep.subr.mxu0 %v567
        %866 = vmatpush1.msra.mxu0 %v566
        %867 = vmatprep.subr.mxu0 %v571
        %868 = vmatpush1.msra.mxu0 %v570
        %869 = vmatprep.subr.mxu0 %v575
        %870 = vmatpush1.msra.mxu0 %v574
        %871 = vmatprep.subr.mxu0 %v579
        %872 = vmatpush1.msra.mxu0 %v578
        %873 = vmatprep.subr.mxu0 %v583
        %874 = vmatpush1.msra.mxu0 %v582
        %875 = vmatprep.subr.mxu0 %v587
        %876 = vmatpush1.msra.mxu0 %v586
        %877 = vmatprep.subr.mxu0 %v591
        %878 = vmatpush1.msra.mxu0 %v590
        %879 = vmatprep.subr.mxu0 %v595
        %880 = vmatpush1.msra.mxu0 %v594
        %881 = vmatprep.subr.mxu0 %v599
        %882 = vmatpush1.msra.mxu0 %v598
        %883 = vmatprep.subr.mxu0 %v603
        %884 = vmatpush1.msra.mxu0 %v602
        %885 = vmatprep.subr.mxu0 %v607
        %886 = vmatpush1.msra.mxu0 %v606
        %887 = vmatprep.subr.mxu0 %v611
        %888 = vmatpush1.msra.mxu0 %v610
        %889 = vmatprep.subr.mxu0 %v615
        %890 = vmatpush1.msra.mxu0 %v614
        %891 = vmatprep.subr.mxu0 %v619
        %892 = vmatpush1.msra.mxu0 %v618
        %893 = vmatprep.subr.mxu0 0.0
        %894 = vmatpush1.msra.mxu0 0.0
        %895 = vmatprep.subr.mxu0 0.0
        %896 = vmatpush1.msra.mxu0 0.0
        %897 = vmatprep.subr.mxu0 0.0
        %898 = vmatpush1.msra.mxu0 0.0
        %899 = vmatprep.subr.mxu0 0.0
        %900 = vmatpush1.msra.mxu0 0.0
        %901 = vmatprep.subr.mxu0 0.0
        %902 = vmatpush1.msra.mxu0 0.0
        %903 = vmatprep.subr.mxu0 0.0
        %904 = vmatpush1.msra.mxu0 0.0
        %905 = vmatprep.subr.mxu0 0.0
        %906 = vmatpush1.msra.mxu0 0.0
        %907 = vmatprep.subr.mxu0 0.0
        %908 = vmatpush1.msra.mxu0 0.0
        %909 = vmatprep.subr.mxu0 0.0
        %910 = vmatpush1.msra.mxu0 0.0
        %911 = vmatprep.subr.mxu0 0.0
        %912 = vmatpush1.msra.mxu0 0.0
        %913 = vmatprep.subr.mxu0 0.0
        %914 = vmatpush1.msra.mxu0 0.0
        %915 = vmatprep.subr.mxu0 0.0
        %916 = vmatpush1.msra.mxu0 0.0
        %917 = vmatprep.subr.mxu0 0.0
        %918 = vmatpush1.msra.mxu0 0.0
        %919 = vmatprep.subr.mxu0 0.0
        %920 = vmatpush1.msra.mxu0 0.0
        %921 = vmatprep.subr.mxu0 0.0
        %922 = vmatpush1.msra.mxu0 0.0
        %923 = vmatprep.subr.mxu0 0.0
        %924 = vmatpush1.msra.mxu0 0.0
        %925 = vmatprep.mubr.f32.mxu0 0.0
        %926 = vmatmul.mubr.f32.gmra.mrb[0].mxu0 %v789
        %v927 = vpop.f32.mrb[0].mxu0
        %v928 = vadd.f32 0.0, %v927
        %v929 = vpop.f32.mrb[0].mxu0
        %v930 = vadd.f32 0.0, %v929
        %931 = vdwg.mxu0
        %v932 = vadd.f32 %v449, %v857
        %v933 = vadd.f32 %v451, %v859
        %v934 = vadd.f32 %v538, %v928
        %v935 = vadd.f32 %v540, %v930
        %v936 = vxor.u32 %v932, 2147483648
        %v937 = vmul.f32 %v936, 1.442695
        %v938 = vpow.pop %v937
        %v939 = vadd.f32 %v938, 1.0
        %v940 = vrcp.pop %v939
        %v941 = vmul.f32 1.0, %v940
        %v942 = vxor.u32 %v933, 2147483648
        %v943 = vmul.f32 %v942, 1.442695
        %v944 = vpow.pop %v943
        %v945 = vadd.f32 %v944, 1.0
        %v946 = vrcp.pop %v945
        %v947 = vmul.f32 1.0, %v946
        %v948 = vtanh.pop %v934
        %v949 = vxor.u32 %v935, 2147483648
        %v950 = vmul.f32 %v949, 1.442695
        %v951 = vpow.pop %v950
        %v952 = vadd.f32 %v951, 1.0
        %v953 = vrcp.pop %v952
        %v954 = vmul.f32 1.0, %v953
        %v955 = vmul.f32 %v947, %v787
        %v956 = vmul.f32 %v941, %v948
        %v957 = vadd.f32 %v955, %v956
        %v958 = vtanh.pop %v957
        %v959 = vmul.f32 %v954, %v958
        %960 = vmatprep.subr.mxu0 %v557
        %961 = vmatpush1.msra.mxu0 %v556
        %962 = vmatprep.subr.mxu0 %v561
        %963 = vmatpush1.msra.mxu0 %v560
        %964 = vmatprep.subr.mxu0 %v565
        %965 = vmatpush1.msra.mxu0 %v564
        %966 = vmatprep.subr.mxu0 %v569
        %967 = vmatpush1.msra.mxu0 %v568
        %968 = vmatprep.subr.mxu0 %v573
        %969 = vmatpush1.msra.mxu0 %v572
        %970 = vmatprep.subr.mxu0 %v577
        %971 = vmatpush1.msra.mxu0 %v576
        %972 = vmatprep.subr.mxu0 %v581
        %973 = vmatpush1.msra.mxu0 %v580
        %974 = vmatprep.subr.mxu0 %v585
        %975 = vmatpush1.msra.mxu0 %v584
        %976 = vmatprep.subr.mxu0 %v589
        %977 = vmatpush1.msra.mxu0 %v588
        %978 = vmatprep.subr.mxu0 %v593
        %979 = vmatpush1.msra.mxu0 %v592
        %980 = vmatprep.subr.mxu0 %v597
        %981 = vmatpush1.msra.mxu0 %v596
        %982 = vmatprep.subr.mxu0 %v601
        %983 = vmatpush1.msra.mxu0 %v600
        %984 = vmatprep.subr.mxu0 %v605
        %985 = vmatpush1.msra.mxu0 %v604
        %986 = vmatprep.subr.mxu0 %v609
        %987 = vmatpush1.msra.mxu0 %v608
        %988 = vmatprep.subr.mxu0 %v613
        %989 = vmatpush1.msra.mxu0 %v612
        %990 = vmatprep.subr.mxu0 %v617
        %991 = vmatpush1.msra.mxu0 %v616
        %992 = vmatprep.subr.mxu0 0.0
        %993 = vmatpush1.msra.mxu0 0.0
        %994 = vmatprep.subr.mxu0 0.0
        %995 = vmatpush1.msra.mxu0 0.0
        %996 = vmatprep.subr.mxu0 0.0
        %997 = vmatpush1.msra.mxu0 0.0
        %998 = vmatprep.subr.mxu0 0.0
        %999 = vmatpush1.msra.mxu0 0.0
        %1000 = vmatprep.subr.mxu0 0.0
        %1001 = vmatpush1.msra.mxu0 0.0
        %1002 = vmatprep.subr.mxu0 0.0
        %1003 = vmatpush1.msra.mxu0 0.0
        %1004 = vmatprep.subr.mxu0 0.0
        %1005 = vmatpush1.msra.mxu0 0.0
        %1006 = vmatprep.subr.mxu0 0.0
        %1007 = vmatpush1.msra.mxu0 0.0
        %1008 = vmatprep.subr.mxu0 0.0
        %1009 = vmatpush1.msra.mxu0 0.0
        %1010 = vmatprep.subr.mxu0 0.0
        %1011 = vmatpush1.msra.mxu0 0.0
        %1012 = vmatprep.subr.mxu0 0.0
        %1013 = vmatpush1.msra.mxu0 0.0
        %1014 = vmatprep.subr.mxu0 0.0
        %1015 = vmatpush1.msra.mxu0 0.0
        %1016 = vmatprep.subr.mxu0 0.0
        %1017 = vmatpush1.msra.mxu0 0.0
        %1018 = vmatprep.subr.mxu0 0.0
        %1019 = vmatpush1.msra.mxu0 0.0
        %1020 = vmatprep.subr.mxu0 0.0
        %1021 = vmatpush1.msra.mxu0 0.0
        %1022 = vmatprep.subr.mxu0 0.0
        %1023 = vmatpush1.msra.mxu0 0.0
        %1024 = vmatprep.mubr.f32.mxu0 0.0
        %1025 = vmatmul.mubr.f32.gmra.mrb[0].mxu0 %v959
        %v1026 = vpop.f32.mrb[0].mxu0
        %v1027 = vadd.f32 0.0, %v1026
        %v1028 = vpop.f32.mrb[0].mxu0
        %v1029 = vadd.f32 0.0, %v1028
        %1030 = vdwg.mxu0
        %1031 = vmatprep.subr.mxu0 %v559
        %1032 = vmatpush1.msra.mxu0 %v558
        %1033 = vmatprep.subr.mxu0 %v563
        %1034 = vmatpush1.msra.mxu0 %v562
        %1035 = vmatprep.subr.mxu0 %v567
        %1036 = vmatpush1.msra.mxu0 %v566
        %1037 = vmatprep.subr.mxu0 %v571
        %1038 = vmatpush1.msra.mxu0 %v570
        %1039 = vmatprep.subr.mxu0 %v575
        %1040 = vmatpush1.msra.mxu0 %v574
        %1041 = vmatprep.subr.mxu0 %v579
        %1042 = vmatpush1.msra.mxu0 %v578
        %1043 = vmatprep.subr.mxu0 %v583
        %1044 = vmatpush1.msra.mxu0 %v582
        %1045 = vmatprep.subr.mxu0 %v587
        %1046 = vmatpush1.msra.mxu0 %v586
        %1047 = vmatprep.subr.mxu0 %v591
        %1048 = vmatpush1.msra.mxu0 %v590
        %1049 = vmatprep.subr.mxu0 %v595
        %1050 = vmatpush1.msra.mxu0 %v594
        %1051 = vmatprep.subr.mxu0 %v599
        %1052 = vmatpush1.msra.mxu0 %v598
        %1053 = vmatprep.subr.mxu0 %v603
        %1054 = vmatpush1.msra.mxu0 %v602
        %1055 = vmatprep.subr.mxu0 %v607
        %1056 = vmatpush1.msra.mxu0 %v606
        %1057 = vmatprep.subr.mxu0 %v611
        %1058 = vmatpush1.msra.mxu0 %v610
        %1059 = vmatprep.subr.mxu0 %v615
        %1060 = vmatpush1.msra.mxu0 %v614
        %1061 = vmatprep.subr.mxu0 %v619
        %1062 = vmatpush1.msra.mxu0 %v618
        %1063 = vmatprep.subr.mxu0 0.0
        %1064 = vmatpush1.msra.mxu0 0.0
        %1065 = vmatprep.subr.mxu0 0.0
        %1066 = vmatpush1.msra.mxu0 0.0
        %1067 = vmatprep.subr.mxu0 0.0
        %1068 = vmatpush1.msra.mxu0 0.0
        %1069 = vmatprep.subr.mxu0 0.0
        %1070 = vmatpush1.msra.mxu0 0.0
        %1071 = vmatprep.subr.mxu0 0.0
        %1072 = vmatpush1.msra.mxu0 0.0
        %1073 = vmatprep.subr.mxu0 0.0
        %1074 = vmatpush1.msra.mxu0 0.0
        %1075 = vmatprep.subr.mxu0 0.0
        %1076 = vmatpush1.msra.mxu0 0.0
        %1077 = vmatprep.subr.mxu0 0.0
        %1078 = vmatpush1.msra.mxu0 0.0
        %1079 = vmatprep.subr.mxu0 0.0
        %1080 = vmatpush1.msra.mxu0 0.0
        %1081 = vmatprep.subr.mxu0 0.0
        %1082 = vmatpush1.msra.mxu0 0.0
        %1083 = vmatprep.subr.mxu0 0.0
        %1084 = vmatpush1.msra.mxu0 0.0
        %1085 = vmatprep.subr.mxu0 0.0
        %1086 = vmatpush1.msra.mxu0 0.0
        %1087 = vmatprep.subr.mxu0 0.0
        %1088 = vmatpush1.msra.mxu0 0.0
        %1089 = vmatprep.subr.mxu0 0.0
        %1090 = vmatpush1.msra.mxu0 0.0
        %1091 = vmatprep.subr.mxu0 0.0
        %1092 = vmatpush1.msra.mxu0 0.0
        %1093 = vmatprep.subr.mxu0 0.0
        %1094 = vmatpush1.msra.mxu0 0.0
        %1095 = vmatprep.mubr.f32.mxu0 0.0
        %1096 = vmatmul.mubr.f32.gmra.mrb[0].mxu0 %v959
        %v1097 = vpop.f32.mrb[0].mxu0
        %v1098 = vadd.f32 0.0, %v1097
        %v1099 = vpop.f32.mrb[0].mxu0
        %v1100 = vadd.f32 0.0, %v1099
        %1101 = vdwg.mxu0
        %v1102 = vadd.f32 %v455, %v1027
        %v1103 = vadd.f32 %v457, %v1029
        %v1104 = vadd.f32 %v544, %v1098
        %v1105 = vadd.f32 %v546, %v1100
        %v1106 = vxor.u32 %v1102, 2147483648
        %v1107 = vmul.f32 %v1106, 1.442695
        %v1108 = vpow.pop %v1107
        %v1109 = vadd.f32 %v1108, 1.0
        %v1110 = vrcp.pop %v1109
        %v1111 = vmul.f32 1.0, %v1110
        %v1112 = vxor.u32 %v1103, 2147483648
        %v1113 = vmul.f32 %v1112, 1.442695
        %v1114 = vpow.pop %v1113
        %v1115 = vadd.f32 %v1114, 1.0
        %v1116 = vrcp.pop %v1115
        %v1117 = vmul.f32 1.0, %v1116
        %v1118 = vtanh.pop %v1104
        %v1119 = vxor.u32 %v1105, 2147483648
        %v1120 = vmul.f32 %v1119, 1.442695
        %v1121 = vpow.pop %v1120
        %v1122 = vadd.f32 %v1121, 1.0
        %v1123 = vrcp.pop %v1122
        %v1124 = vmul.f32 1.0, %v1123
        %v1125 = vmul.f32 %v1117, %v957
        %v1126 = vmul.f32 %v1111, %v1118
        %v1127 = vadd.f32 %v1125, %v1126
        %v1128 = vtanh.pop %v1127
        %v1129 = vmul.f32 %v1124, %v1128
        %1130 = vmatprep.subr.mxu0 %v557
        %1131 = vmatpush1.msra.mxu0 %v556
        %1132 = vmatprep.subr.mxu0 %v561
        %1133 = vmatpush1.msra.mxu0 %v560
        %1134 = vmatprep.subr.mxu0 %v565
        %1135 = vmatpush1.msra.mxu0 %v564
        %1136 = vmatprep.subr.mxu0 %v569
        %1137 = vmatpush1.msra.mxu0 %v568
        %1138 = vmatprep.subr.mxu0 %v573
        %1139 = vmatpush1.msra.mxu0 %v572
        %1140 = vmatprep.subr.mxu0 %v577
        %1141 = vmatpush1.msra.mxu0 %v576
        %1142 = vmatprep.subr.mxu0 %v581
        %1143 = vmatpush1.msra.mxu0 %v580
        %1144 = vmatprep.subr.mxu0 %v585
        %1145 = vmatpush1.msra.mxu0 %v584
        %1146 = vmatprep.subr.mxu0 %v589
        %1147 = vmatpush1.msra.mxu0 %v588
        %1148 = vmatprep.subr.mxu0 %v593
        %1149 = vmatpush1.msra.mxu0 %v592
        %1150 = vmatprep.subr.mxu0 %v597
        %1151 = vmatpush1.msra.mxu0 %v596
        %1152 = vmatprep.subr.mxu0 %v601
        %1153 = vmatpush1.msra.mxu0 %v600
        %1154 = vmatprep.subr.mxu0 %v605
        %1155 = vmatpush1.msra.mxu0 %v604
        %1156 = vmatprep.subr.mxu0 %v609
        %1157 = vmatpush1.msra.mxu0 %v608
        %1158 = vmatprep.subr.mxu0 %v613
        %1159 = vmatpush1.msra.mxu0 %v612
        %1160 = vmatprep.subr.mxu0 %v617
        %1161 = vmatpush1.msra.mxu0 %v616
        %1162 = vmatprep.subr.mxu0 0.0
        %1163 = vmatpush1.msra.mxu0 0.0
        %1164 = vmatprep.subr.mxu0 0.0
        %1165 = vmatpush1.msra.mxu0 0.0
        %1166 = vmatprep.subr.mxu0 0.0
        %1167 = vmatpush1.msra.mxu0 0.0
        %1168 = vmatprep.subr.mxu0 0.0
        %1169 = vmatpush1.msra.mxu0 0.0
        %1170 = vmatprep.subr.mxu0 0.0
        %1171 = vmatpush1.msra.mxu0 0.0
        %1172 = vmatprep.subr.mxu0 0.0
        %1173 = vmatpush1.msra.mxu0 0.0
        %1174 = vmatprep.subr.mxu0 0.0
        %1175 = vmatpush1.msra.mxu0 0.0
        %1176 = vmatprep.subr.mxu0 0.0
        %1177 = vmatpush1.msra.mxu0 0.0
        %1178 = vmatprep.subr.mxu0 0.0
        %1179 = vmatpush1.msra.mxu0 0.0
        %1180 = vmatprep.subr.mxu0 0.0
        %1181 = vmatpush1.msra.mxu0 0.0
        %1182 = vmatprep.subr.mxu0 0.0
        %1183 = vmatpush1.msra.mxu0 0.0
        %1184 = vmatprep.subr.mxu0 0.0
        %1185 = vmatpush1.msra.mxu0 0.0
        %1186 = vmatprep.subr.mxu0 0.0
        %1187 = vmatpush1.msra.mxu0 0.0
        %1188 = vmatprep.subr.mxu0 0.0
        %1189 = vmatpush1.msra.mxu0 0.0
        %1190 = vmatprep.subr.mxu0 0.0
        %1191 = vmatpush1.msra.mxu0 0.0
        %1192 = vmatprep.subr.mxu0 0.0
        %1193 = vmatpush1.msra.mxu0 0.0
        %1194 = vmatprep.mubr.f32.mxu0 0.0
        %1195 = vmatmul.mubr.f32.gmra.mrb[0].mxu0 %v1129
        %v1196 = vpop.f32.mrb[0].mxu0
        %v1197 = vadd.f32 0.0, %v1196
        %v1198 = vpop.f32.mrb[0].mxu0
        %v1199 = vadd.f32 0.0, %v1198
        %1200 = vdwg.mxu0
        %1201 = vmatprep.subr.mxu0 %v559
        %1202 = vmatpush1.msra.mxu0 %v558
        %1203 = vmatprep.subr.mxu0 %v563
        %1204 = vmatpush1.msra.mxu0 %v562
        %1205 = vmatprep.subr.mxu0 %v567
        %1206 = vmatpush1.msra.mxu0 %v566
        %1207 = vmatprep.subr.mxu0 %v571
        %1208 = vmatpush1.msra.mxu0 %v570
        %1209 = vmatprep.subr.mxu0 %v575
        %1210 = vmatpush1.msra.mxu0 %v574
        %1211 = vmatprep.subr.mxu0 %v579
        %1212 = vmatpush1.msra.mxu0 %v578
        %1213 = vmatprep.subr.mxu0 %v583
        %1214 = vmatpush1.msra.mxu0 %v582
        %1215 = vmatprep.subr.mxu0 %v587
        %1216 = vmatpush1.msra.mxu0 %v586
        %1217 = vmatprep.subr.mxu0 %v591
        %1218 = vmatpush1.msra.mxu0 %v590
        %1219 = vmatprep.subr.mxu0 %v595
        %1220 = vmatpush1.msra.mxu0 %v594
        %1221 = vmatprep.subr.mxu0 %v599
        %1222 = vmatpush1.msra.mxu0 %v598
        %1223 = vmatprep.subr.mxu0 %v603
        %1224 = vmatpush1.msra.mxu0 %v602
        %1225 = vmatprep.subr.mxu0 %v607
        %1226 = vmatpush1.msra.mxu0 %v606
        %1227 = vmatprep.subr.mxu0 %v611
        %1228 = vmatpush1.msra.mxu0 %v610
        %1229 = vmatprep.subr.mxu0 %v615
        %1230 = vmatpush1.msra.mxu0 %v614
        %1231 = vmatprep.subr.mxu0 %v619
        %1232 = vmatpush1.msra.mxu0 %v618
        %1233 = vmatprep.subr.mxu0 0.0
        %1234 = vmatpush1.msra.mxu0 0.0
        %1235 = vmatprep.subr.mxu0 0.0
        %1236 = vmatpush1.msra.mxu0 0.0
        %1237 = vmatprep.subr.mxu0 0.0
        %1238 = vmatpush1.msra.mxu0 0.0
        %1239 = vmatprep.subr.mxu0 0.0
        %1240 = vmatpush1.msra.mxu0 0.0
        %1241 = vmatprep.subr.mxu0 0.0
        %1242 = vmatpush1.msra.mxu0 0.0
        %1243 = vmatprep.subr.mxu0 0.0
        %1244 = vmatpush1.msra.mxu0 0.0
        %1245 = vmatprep.subr.mxu0 0.0
        %1246 = vmatpush1.msra.mxu0 0.0
        %1247 = vmatprep.subr.mxu0 0.0
        %1248 = vmatpush1.msra.mxu0 0.0
        %1249 = vmatprep.subr.mxu0 0.0
        %1250 = vmatpush1.msra.mxu0 0.0
        %1251 = vmatprep.subr.mxu0 0.0
        %1252 = vmatpush1.msra.mxu0 0.0
        %1253 = vmatprep.subr.mxu0 0.0
        %1254 = vmatpush1.msra.mxu0 0.0
        %1255 = vmatprep.subr.mxu0 0.0
        %1256 = vmatpush1.msra.mxu0 0.0
        %1257 = vmatprep.subr.mxu0 0.0
        %1258 = vmatpush1.msra.mxu0 0.0
        %1259 = vmatprep.subr.mxu0 0.0
        %1260 = vmatpush1.msra.mxu0 0.0
        %1261 = vmatprep.subr.mxu0 0.0
        %1262 = vmatpush1.msra.mxu0 0.0
        %1263 = vmatprep.subr.mxu0 0.0
        %1264 = vmatpush1.msra.mxu0 0.0
        %1265 = vmatprep.mubr.f32.mxu0 0.0
        %1266 = vmatmul.mubr.f32.gmra.mrb[0].mxu0 %v1129
        %v1267 = vpop.f32.mrb[0].mxu0
        %v1268 = vadd.f32 0.0, %v1267
        %v1269 = vpop.f32.mrb[0].mxu0
        %v1270 = vadd.f32 0.0, %v1269
        %1271 = vdwg.mxu0
        %v1272 = vadd.f32 %v461, %v1197
        %v1273 = vadd.f32 %v463, %v1199
        %v1274 = vadd.f32 %v550, %v1268
        %v1275 = vadd.f32 %v552, %v1270
        %v1276 = vxor.u32 %v1272, 2147483648
        %v1277 = vmul.f32 %v1276, 1.442695
        %v1278 = vpow.pop %v1277
        %v1279 = vadd.f32 %v1278, 1.0
        %v1280 = vrcp.pop %v1279
        %v1281 = vmul.f32 1.0, %v1280
        %v1282 = vxor.u32 %v1273, 2147483648
        %v1283 = vmul.f32 %v1282, 1.442695
        %v1284 = vpow.pop %v1283
        %v1285 = vadd.f32 %v1284, 1.0
        %v1286 = vrcp.pop %v1285
        %v1287 = vmul.f32 1.0, %v1286
        %v1288 = vtanh.pop %v1274
        %v1289 = vxor.u32 %v1275, 2147483648
        %v1290 = vmul.f32 %v1289, 1.442695
        %v1291 = vpow.pop %v1290
        %v1292 = vadd.f32 %v1291, 1.0
        %v1293 = vrcp.pop %v1292
        %v1294 = vmul.f32 1.0, %v1293
        %v1295 = vmul.f32 %v1287, %v1127
        %v1296 = vmul.f32 %v1281, %v1288
        %v1297 = vadd.f32 %v1295, %v1296
        %v1298 = vtanh.pop %v1297
        %v1299 = vmul.f32 %v1294, %v1298
        %1300 = vst [vmem:[#allocation2] sm:$0xff] %v1299
        %1301 = vst [vmem:[#allocation3] sm:$0xff] %v1297
        %p1302 = scmp.eq.s32.totalorder %s28, 1
        // Predicated region
        $region65: #{tpu_custom_call.1} parent=43 // pred_check
          %p1303 = pneg %p1302
        $region66: #{tpu_custom_call.1} parent=43 // pred_check_branch
          %1305 = sbr.rel (%p1303) target = $region68
        $region67: #{tpu_custom_call.1} parent=43 // pred_region
          %v1306 = vld [vmem:[#allocation2] sm:$0xff]
          %v1307 = vld [vmem:[#allocation10] sm:$0xff]
          %v1308 = vld [vmem:[#allocation10 + $0x8] sm:$0xff]
          %v1309 = vld [vmem:[#allocation10 + $0x10] sm:$0xff]
          %v1310 = vld [vmem:[#allocation10 + $0x18] sm:$0xff]
          %v1311 = vld [vmem:[#allocation10 + $0x20] sm:$0xff]
          %v1312 = vld [vmem:[#allocation10 + $0x28] sm:$0xff]
          %v1313 = vld [vmem:[#allocation10 + $0x30] sm:$0xff]
          %v1314 = vld [vmem:[#allocation10 + $0x38] sm:$0xff]
          %v1315 = vld [vmem:[#allocation10 + $0x40] sm:$0xff]
          %v1316 = vld [vmem:[#allocation10 + $0x48] sm:$0xff]
          %v1317 = vld [vmem:[#allocation10 + $0x50] sm:$0xff]
          %v1318 = vld [vmem:[#allocation10 + $0x58] sm:$0xff]
          %v1319 = vld [vmem:[#allocation10 + $0x60] sm:$0xff]
          %v1320 = vld [vmem:[#allocation10 + $0x68] sm:$0xff]
          %v1321 = vld [vmem:[#allocation10 + $0x70] sm:$0xff]
          %v1322 = vld [vmem:[#allocation10 + $0x78] sm:$0xff]
          %v1323 = vld [vmem:[%s5] sm:$0x1]
          %v1325 = vlaneseq
          %v1326 = vshrl.u32 %v1325, 7
          %v1327 = vsub.s32 0, %v1326
          %v1328 = vrot.slane %v1323, %v1327
          %1330 = vmatprep.subr.mxu0 0.0
          %1331 = vmatpush1.msra.mxu0 %v1307
          %1332 = vmatprep.subr.mxu0 0.0
          %1333 = vmatpush1.msra.mxu0 %v1308
          %1334 = vmatprep.subr.mxu0 0.0
          %1335 = vmatpush1.msra.mxu0 %v1309
          %1336 = vmatprep.subr.mxu0 0.0
          %1337 = vmatpush1.msra.mxu0 %v1310
          %1338 = vmatprep.subr.mxu0 0.0
          %1339 = vmatpush1.msra.mxu0 %v1311
          %1340 = vmatprep.subr.mxu0 0.0
          %1341 = vmatpush1.msra.mxu0 %v1312
          %1342 = vmatprep.subr.mxu0 0.0
          %1343 = vmatpush1.msra.mxu0 %v1313
          %1344 = vmatprep.subr.mxu0 0.0
          %1345 = vmatpush1.msra.mxu0 %v1314
          %1346 = vmatprep.subr.mxu0 0.0
          %1347 = vmatpush1.msra.mxu0 %v1315
          %1348 = vmatprep.subr.mxu0 0.0
          %1349 = vmatpush1.msra.mxu0 %v1316
          %1350 = vmatprep.subr.mxu0 0.0
          %1351 = vmatpush1.msra.mxu0 %v1317
          %1352 = vmatprep.subr.mxu0 0.0
          %1353 = vmatpush1.msra.mxu0 %v1318
          %1354 = vmatprep.subr.mxu0 0.0
          %1355 = vmatpush1.msra.mxu0 %v1319
          %1356 = vmatprep.subr.mxu0 0.0
          %1357 = vmatpush1.msra.mxu0 %v1320
          %1358 = vmatprep.subr.mxu0 0.0
          %1359 = vmatpush1.msra.mxu0 %v1321
          %1360 = vmatprep.subr.mxu0 0.0
          %1361 = vmatpush1.msra.mxu0 %v1322
          %1362 = vmatprep.subr.mxu0 0.0
          %1363 = vmatpush1.msra.mxu0 0.0
          %1364 = vmatprep.subr.mxu0 0.0
          %1365 = vmatpush1.msra.mxu0 0.0
          %1366 = vmatprep.subr.mxu0 0.0
          %1367 = vmatpush1.msra.mxu0 0.0
          %1368 = vmatprep.subr.mxu0 0.0
          %1369 = vmatpush1.msra.mxu0 0.0
          %1370 = vmatprep.subr.mxu0 0.0
          %1371 = vmatpush1.msra.mxu0 0.0
          %1372 = vmatprep.subr.mxu0 0.0
          %1373 = vmatpush1.msra.mxu0 0.0
          %1374 = vmatprep.subr.mxu0 0.0
          %1375 = vmatpush1.msra.mxu0 0.0
          %1376 = vmatprep.subr.mxu0 0.0
          %1377 = vmatpush1.msra.mxu0 0.0
          %1378 = vmatprep.subr.mxu0 0.0
          %1379 = vmatpush1.msra.mxu0 0.0
          %1380 = vmatprep.subr.mxu0 0.0
          %1381 = vmatpush1.msra.mxu0 0.0
          %1382 = vmatprep.subr.mxu0 0.0
          %1383 = vmatpush1.msra.mxu0 0.0
          %1384 = vmatprep.subr.mxu0 0.0
          %1385 = vmatpush1.msra.mxu0 0.0
          %1386 = vmatprep.subr.mxu0 0.0
          %1387 = vmatpush1.msra.mxu0 0.0
          %1388 = vmatprep.subr.mxu0 0.0
          %1389 = vmatpush1.msra.mxu0 0.0
          %1390 = vmatprep.subr.mxu0 0.0
          %1391 = vmatpush1.msra.mxu0 0.0
          %1392 = vmatprep.subr.mxu0 0.0
          %1393 = vmatpush1.msra.mxu0 0.0
          %1394 = vmatprep.mubr.f32.mxu0 0.0
          %1395 = vmatmul.mubr.f32.gmra.mrb[0].mxu0 %v1306
          %v1396 = vpop.f32.mrb[0].mxu0
          %v1397 = vadd.f32 %v1328, %v1396
          %v1398 = vpop.f32.mrb[0].mxu0
          %1399 = vdwg.mxu0
          %1400 = vst [vmem:[#allocation12] sm:$0xff] %v1397
        $region68: #{tpu_custom_call.1} parent=43 // pred_fallthru
          _
        // Predicated region
        $region69: #{tpu_custom_call.1} parent=43 // pred_check
          %p1401 = pneg %p186
        $region70: #{tpu_custom_call.1} parent=43 // pred_check_branch
          %1403 = sbr.rel (%p1401) target = $region72
        $region71: #{tpu_custom_call.1} parent=43 // pred_region
          %s1405 = ssub.s32 128, 128
          %1406 = vsyncadd [#allocation6], %s1405
          %s1407 = smul.addr %s27, 128
          %s1408 = scalar_lea.hbm %s6, %s1407
          %s1410 = sshll.u32 [#allocation12], 4
          %s1411 = int_to_ptr.vmem [resolvable:$true] %s1410
          %1413 = dma.vmem_to_hbm [thread:$0]  %s1411, 128, %s1408, [#allocation6]
        $region72: #{tpu_custom_call.1} parent=43 // pred_fallthru
          _
        // Predicated region
        $region73: #{tpu_custom_call.1} parent=43 // pred_check
          %p1414 = pneg %p186
        $region74: #{tpu_custom_call.1} parent=43 // pred_check_branch
          %1416 = sbr.rel (%p1414) target = $region76
        $region75: #{tpu_custom_call.1} parent=43 // pred_region
          %1417 = dma.done [#allocation6], 128
        $region76: #{tpu_custom_call.1} parent=43 // pred_fallthru
          _
      $region44: #{tpu_custom_call.1} parent=5 // pred_fallthru
        _
      %p1418 = scmp.le.s32.totalorder 2, %s18
      // Predicated region
      $region77: #{tpu_custom_call.1} parent=5 // pred_check
        %p1419 = pneg %p1418
      $region78: #{tpu_custom_call.1} parent=5 // pred_check_branch
        %1421 = sbr.rel (%p1419) target = $region80
      $region79: #{tpu_custom_call.1} parent=5 // pred_region
        %s1422 = ssub.s32 %s18, 2
      $region80: #{tpu_custom_call.1} parent=5 // pred_fallthru
        _
    $region6: #{tpu_custom_call.1} parent=1 // loop_footer
      %s22 = sadd.s32 1, %s18
    $region7: #{tpu_custom_call.1} parent=1 // loop_footer_branch
      %17 = sbr.rel target = $region3
    $region8: #{tpu_custom_call.1} parent=1 // loop_exit
      _
    %1423 = vsyncpa [#allocation5], 1
    %s1424 = scalar_lea.sflag [#allocation5], 1
    %1425 = vsyncpa %s1424, 1
    %1426 = vsyncpa [#allocation8], 1
    %1427 = vsyncpa [#allocation11], 1
    %1428 = vsyncpa [#allocation6], 1
    %s1429 = scalar_lea.sflag [#allocation6], 1
    %1430 = vsyncpa %s1429, 1

</llo_original>
